<compile_context>
chip_gen: v5e
topology: v5e:2x2
jax: 0.10.0
libtpu: 0.0.40
codegen_flags: <defaults>
</compile_context>

<pallas_src>
import jax
import jax.numpy as jnp
from jax import lax
from jax.experimental import pallas as pl
from jax.experimental.pallas import tpu as pltpu
import numpy as np

HIDDEN = 50          # logical hidden size (PyTorch)
HIDDEN_PAD = 64      # padded hidden size (sublane/lane friendly)
INPUT = 1


def lstm_linear_kernel(x_ref, w_ih_ref, w_hh_ref, b_ref, w_lin_ref, b_lin_ref,
                       out_ref, pre_ref, hs_ref):
    # x_ref:     (T, B, 1)         f32
    # w_ih_ref:  (1, 1, 4*Hp)      per-gate input weights, gate-major (i,f,g,o)
    # w_hh_ref:  (Hp, 4*Hp)        fused recurrent weights, h @ W gives gates
    # b_ref:     (1, 1, 4*Hp)      b_ih + b_hh, gate-major
    # w_lin_ref: (1, Hp)           Linear weights (padded lanes are zero)
    # b_lin_ref: (1, 1)  SMEM      Linear bias (scalar)
    # out_ref:   (T, B)            per-timestep scalar output
    # pre_ref:   (T, B, 4*Hp)      VMEM scratch: input+bias contribution
    # hs_ref:    (T, B, Hp)        VMEM scratch: hidden states for all steps
    T, B, _ = x_ref.shape
    Hp = w_hh_ref.shape[0]

    # ---- hoisted, non-recurrent work: input & bias contribution for all T ----
    pre_ref[...] = x_ref[...] * w_ih_ref[...] + b_ref[...]        # (T, B, 4*Hp)

    # hoist weight load out of the recurrence
    w_hh = w_hh_ref[...]                                          # (Hp, 4*Hp)

    h0 = jnp.zeros((B, Hp), jnp.float32)
    c0 = jnp.zeros((B, Hp), jnp.float32)

    def body(t, carry):
        h, c = carry
        # single fused gate matmul on the critical path: (B,Hp) @ (Hp,4Hp)
        gates = pre_ref[t] + jnp.dot(h, w_hh,
                                     preferred_element_type=jnp.float32)
        i_g = jax.nn.sigmoid(gates[:, 0 * Hp:1 * Hp])
        f_g = jax.nn.sigmoid(gates[:, 1 * Hp:2 * Hp])
        g_g = jnp.tanh(gates[:, 2 * Hp:3 * Hp])
        o_g = jax.nn.sigmoid(gates[:, 3 * Hp:4 * Hp])

        c_new = f_g * c + i_g * g_g
        h_new = o_g * jnp.tanh(c_new)

        hs_ref[t] = h_new                                         # lane-dense store
        return (h_new, c_new)

    lax.fori_loop(0, T, body, (h0, c0), unroll=True)

    # ---- post-loop Linear(50 -> 1): one reduction + one slab store ----
    hs = hs_ref[...]                                              # (T, B, Hp)
    y = jnp.sum(hs * w_lin_ref[...], axis=-1) + b_lin_ref[0, 0]   # (T, B)
    out_ref[...] = y


def lstm_model_forward(x, params):
    """x: (B, T, 1) float32 (batch_first, like PyTorch). Returns (B, T, 1)."""
    w_ih, w_hh, b_ih, b_hh, w_lin, b_lin = params
    B, T, _ = x.shape
    H, Hp = HIDDEN, HIDDEN_PAD

    # ---- repack & zero-pad parameters for the kernel (gate order i,f,g,o) ----
    w_ih_g = w_ih.reshape(4, H)                         # (4, H)   (input_size==1)
    b_g = (b_ih + b_hh).reshape(4, H)                   # (4, H)
    w_hh_g = w_hh.reshape(4, H, H)                      # (4, H, H)

    w_ih_p = jnp.zeros((4, Hp), jnp.float32).at[:, :H].set(w_ih_g)
    b_p = jnp.zeros((4, Hp), jnp.float32).at[:, :H].set(b_g)
    w_hh_p = jnp.zeros((4, Hp, Hp), jnp.float32).at[:, :H, :H].set(w_hh_g)

    # fused recurrent weight: columns [g*Hp:(g+1)*Hp] = W_hh_gate.T (padded)
    w_hh_all = jnp.concatenate([w_hh_p[g].T for g in range(4)], axis=1)  # (Hp, 4Hp)
    w_ih_all = w_ih_p.reshape(1, 1, 4 * Hp)                              # (1,1,4Hp)
    b_all = b_p.reshape(1, 1, 4 * Hp)                                    # (1,1,4Hp)

    w_lin_p = jnp.zeros((1, Hp), jnp.float32).at[:, :H].set(w_lin.reshape(1, H))
    b_lin_k = b_lin.reshape(1, 1).astype(jnp.float32)                    # SMEM scalar

    x_tm = jnp.transpose(x, (1, 0, 2)).astype(jnp.float32)               # (T, B, 1)

    vmem = pl.BlockSpec(memory_space=pltpu.MemorySpace.VMEM)
    smem = pl.BlockSpec(memory_space=pltpu.MemorySpace.SMEM)

    out_tb = pl.pallas_call(
        lstm_linear_kernel,
        out_shape=jax.ShapeDtypeStruct((T, B), jnp.float32),
        in_specs=[vmem, vmem, vmem, vmem, vmem, smem],
        out_specs=vmem,
        scratch_shapes=[
            pltpu.VMEM((T, B, 4 * Hp), jnp.float32),   # pre (input+bias contrib)
            pltpu.VMEM((T, B, Hp), jnp.float32),       # hs  (hidden states)
        ],
    )(x_tm, w_ih_all, w_hh_all, b_all, w_lin_p, b_lin_k)

    return jnp.transpose(out_tb, (1, 0))[:, :, None]                     # (B, T, 1)


def ref_forward(x, params):
    """Pure-JAX reference with PyTorch LSTM semantics (gate order i,f,g,o)."""
    w_ih, w_hh, b_ih, b_hh, w_lin, b_lin = params
    B, T, _ = x.shape
    H = HIDDEN

    def step(carry, x_t):
        h, c = carry
        gates = x_t @ w_ih.T + h @ w_hh.T + b_ih + b_hh  # (B, 4H)
        i = jax.nn.sigmoid(gates[:, 0 * H:1 * H])
        f = jax.nn.sigmoid(gates[:, 1 * H:2 * H])
        g = jnp.tanh(gates[:, 2 * H:3 * H])
        o = jax.nn.sigmoid(gates[:, 3 * H:4 * H])
        c = f * c + i * g
        h = o * jnp.tanh(c)
        return (h, c), h

    h0 = jnp.zeros((B, H), jnp.float32)
    c0 = jnp.zeros((B, H), jnp.float32)
    _, hs = lax.scan(step, (h0, c0), jnp.transpose(x, (1, 0, 2)))  # (T,B,H)
    y = hs @ w_lin.T + b_lin                                       # (T,B,1)
    return jnp.transpose(y, (1, 0, 2))


def init_params(key):
    """Deterministic init matching PyTorch parameter shapes (uniform +-1/sqrt(H))."""
    H = HIDDEN
    k = 1.0 / np.sqrt(H)
    keys = jax.random.split(key, 6)
    w_ih = jax.random.uniform(keys[0], (4 * H, INPUT), jnp.float32, -k, k)
    w_hh = jax.random.uniform(keys[1], (4 * H, H), jnp.float32, -k, k)
    b_ih = jax.random.uniform(keys[2], (4 * H,), jnp.float32, -k, k)
    b_hh = jax.random.uniform(keys[3], (4 * H,), jnp.float32, -k, k)
    w_lin = jax.random.uniform(keys[4], (1, H), jnp.float32, -k, k)
    b_lin = jax.random.uniform(keys[5], (1,), jnp.float32, -k, k)
    return (w_ih, w_hh, b_ih, b_hh, w_lin, b_lin)


if __name__ == "__main__":
    key = jax.random.PRNGKey(0)
    pkey, xkey = jax.random.split(key)
    params = init_params(pkey)

    B, T = 2, 8
    x = jax.random.normal(xkey, (B, T, INPUT), jnp.float32)

    out = jax.block_until_ready(lstm_model_forward(x, params))
    ref = jax.block_until_ready(ref_forward(x, params))

    assert out.shape == (B, T, 1)
    np.testing.assert_allclose(np.asarray(out), np.asarray(ref),
                               rtol=1e-4, atol=1e-4)
    print("KERNEL_OK")
</pallas_src>

<mosaic_0001>
module attributes {stable_mosaic.version = 11 : i64} {
  func.func @lstm_linear_kernel(%arg0: memref<8x2x1xf32, #tpu.memory_space<vmem>>, %arg1: memref<1x1x256xf32, #tpu.memory_space<vmem>>, %arg2: memref<64x256xf32, #tpu.memory_space<vmem>>, %arg3: memref<1x1x256xf32, #tpu.memory_space<vmem>>, %arg4: memref<1x64xf32, #tpu.memory_space<vmem>>, %arg5: memref<1x1xf32, #tpu.memory_space<smem>>, %arg6: memref<8x2xf32, #tpu.memory_space<vmem>>, %arg7: memref<8x2x256xf32, #tpu.memory_space<vmem>>, %arg8: memref<8x2x64xf32, #tpu.memory_space<vmem>>) attributes {dimension_semantics = [], scalar_prefetch = 0 : i64, scratch_operands = 2 : i64, tpu.core_type = #tpu.core_type<tc>} {
    %c0 = arith.constant 0 : index
    %c0_0 = arith.constant 0 : index
    %c0_1 = arith.constant 0 : index
    %0 = vector.load %arg0[%c0, %c0_0, %c0_1] : memref<8x2x1xf32, #tpu.memory_space<vmem>>, vector<8x2x1xf32>
    %c0_2 = arith.constant 0 : index
    %c0_3 = arith.constant 0 : index
    %c0_4 = arith.constant 0 : index
    %1 = vector.load %arg1[%c0_2, %c0_3, %c0_4] : memref<1x1x256xf32, #tpu.memory_space<vmem>>, vector<1x1x256xf32>
    %2 = vector.broadcast %0 : vector<8x2x1xf32> to vector<8x2x256xf32>
    %3 = vector.broadcast %1 : vector<1x1x256xf32> to vector<8x2x256xf32>
    %4 = arith.mulf %2, %3 : vector<8x2x256xf32>
    %c0_5 = arith.constant 0 : index
    %c0_6 = arith.constant 0 : index
    %c0_7 = arith.constant 0 : index
    %5 = vector.load %arg3[%c0_5, %c0_6, %c0_7] : memref<1x1x256xf32, #tpu.memory_space<vmem>>, vector<1x1x256xf32>
    %6 = vector.broadcast %5 : vector<1x1x256xf32> to vector<8x2x256xf32>
    %7 = arith.addf %4, %6 : vector<8x2x256xf32>
    %c0_8 = arith.constant 0 : index
    %c0_9 = arith.constant 0 : index
    %c0_10 = arith.constant 0 : index
    %8 = vector.load %arg7[%c0_8, %c0_9, %c0_10] : memref<8x2x256xf32, #tpu.memory_space<vmem>>, vector<8x2x256xf32>
    tpu.vector_store %arg7[%c0_8, %c0_9, %c0_10], %7 {strides = array<i32>} : memref<8x2x256xf32, #tpu.memory_space<vmem>>, vector<8x2x256xf32>,
    %c0_11 = arith.constant 0 : index
    %c0_12 = arith.constant 0 : index
    %9 = vector.load %arg2[%c0_11, %c0_12] : memref<64x256xf32, #tpu.memory_space<vmem>>, vector<64x256xf32>
    %cst = arith.constant 0.000000e+00 : f32
    %10 = vector.broadcast %cst : f32 to vector<2x64xf32>
    %cst_13 = arith.constant 0.000000e+00 : f32
    %11 = vector.broadcast %cst_13 : f32 to vector<2x64xf32>
    %c0_i32 = arith.constant 0 : i32
    %12 = arith.index_cast %c0_i32 : i32 to index
    %c0_14 = arith.constant 0 : index
    %c0_15 = arith.constant 0 : index
    %13 = vector.load %arg7[%12, %c0_14, %c0_15] : memref<8x2x256xf32, #tpu.memory_space<vmem>>, vector<1x2x256xf32>
    %14 = vector.shape_cast %13 : vector<1x2x256xf32> to vector<2x256xf32>
    %cst_16 = arith.constant dense<0.000000e+00> : vector<2x256xf32>
    %15 = tpu.matmul %10, %9, %cst_16 {dimension_numbers = #tpu.dot_dimension_numbers<[1], [0], [0], [1], [0, 0, 1, 1], [], []>} : vector<2x64xf32>, vector<64x256xf32>, vector<2x256xf32> -> vector<2x256xf32>
    %16 = arith.addf %14, %15 : vector<2x256xf32>
    %17 = vector.extract_strided_slice %16 {offsets = [0, 0], sizes = [2, 64], strides = [1, 1]} : vector<2x256xf32> to vector<2x64xf32>
    %18 = arith.negf %17 : vector<2x64xf32>
    %19 = math.exp %18 : vector<2x64xf32>
    %cst_17 = arith.constant 1.000000e+00 : f32
    %20 = vector.broadcast %cst_17 : f32 to vector<2x64xf32>
    %21 = arith.addf %20, %19 : vector<2x64xf32>
    %22 = arith.divf %20, %21 : vector<2x64xf32>
    %23 = vector.extract_strided_slice %16 {offsets = [0, 64], sizes = [2, 64], strides = [1, 1]} : vector<2x256xf32> to vector<2x64xf32>
    %24 = arith.negf %23 : vector<2x64xf32>
    %25 = math.exp %24 : vector<2x64xf32>
    %cst_18 = arith.constant 1.000000e+00 : f32
    %26 = vector.broadcast %cst_18 : f32 to vector<2x64xf32>
    %27 = arith.addf %26, %25 : vector<2x64xf32>
    %28 = arith.divf %26, %27 : vector<2x64xf32>
    %29 = vector.extract_strided_slice %16 {offsets = [0, 128], sizes = [2, 64], strides = [1, 1]} : vector<2x256xf32> to vector<2x64xf32>
    %30 = math.tanh %29 : vector<2x64xf32>
    %31 = vector.extract_strided_slice %16 {offsets = [0, 192], sizes = [2, 64], strides = [1, 1]} : vector<2x256xf32> to vector<2x64xf32>
    %32 = arith.negf %31 : vector<2x64xf32>
    %33 = math.exp %32 : vector<2x64xf32>
    %cst_19 = arith.constant 1.000000e+00 : f32
    %34 = vector.broadcast %cst_19 : f32 to vector<2x64xf32>
    %35 = arith.addf %34, %33 : vector<2x64xf32>
    %36 = arith.divf %34, %35 : vector<2x64xf32>
    %37 = arith.mulf %28, %11 : vector<2x64xf32>
    %38 = arith.mulf %22, %30 : vector<2x64xf32>
    %39 = arith.addf %37, %38 : vector<2x64xf32>
    %40 = math.tanh %39 : vector<2x64xf32>
    %41 = arith.mulf %36, %40 : vector<2x64xf32>
    %42 = arith.index_cast %c0_i32 : i32 to index
    %c0_20 = arith.constant 0 : index
    %c0_21 = arith.constant 0 : index
    %43 = vector.load %arg8[%42, %c0_20, %c0_21] : memref<8x2x64xf32, #tpu.memory_space<vmem>>, vector<1x2x64xf32>
    %44 = vector.shape_cast %43 : vector<1x2x64xf32> to vector<2x64xf32>
    %45 = vector.shape_cast %41 : vector<2x64xf32> to vector<1x2x64xf32>
    tpu.vector_store %arg8[%42, %c0_20, %c0_21], %45 {strides = array<i32>} : memref<8x2x64xf32, #tpu.memory_space<vmem>>, vector<1x2x64xf32>,
    %c1_i32 = arith.constant 1 : i32
    %46 = arith.index_cast %c1_i32 : i32 to index
    %c0_22 = arith.constant 0 : index
    %c0_23 = arith.constant 0 : index
    %47 = vector.load %arg7[%46, %c0_22, %c0_23] : memref<8x2x256xf32, #tpu.memory_space<vmem>>, vector<1x2x256xf32>
    %48 = vector.shape_cast %47 : vector<1x2x256xf32> to vector<2x256xf32>
    %cst_24 = arith.constant dense<0.000000e+00> : vector<2x256xf32>
    %49 = tpu.matmul %41, %9, %cst_24 {dimension_numbers = #tpu.dot_dimension_numbers<[1], [0], [0], [1], [0, 0, 1, 1], [], []>} : vector<2x64xf32>, vector<64x256xf32>, vector<2x256xf32> -> vector<2x256xf32>
    %50 = arith.addf %48, %49 : vector<2x256xf32>
    %51 = vector.extract_strided_slice %50 {offsets = [0, 0], sizes = [2, 64], strides = [1, 1]} : vector<2x256xf32> to vector<2x64xf32>
    %52 = arith.negf %51 : vector<2x64xf32>
    %53 = math.exp %52 : vector<2x64xf32>
    %cst_25 = arith.constant 1.000000e+00 : f32
    %54 = vector.broadcast %cst_25 : f32 to vector<2x64xf32>
    %55 = arith.addf %54, %53 : vector<2x64xf32>
    %56 = arith.divf %54, %55 : vector<2x64xf32>
    %57 = vector.extract_strided_slice %50 {offsets = [0, 64], sizes = [2, 64], strides = [1, 1]} : vector<2x256xf32> to vector<2x64xf32>
    %58 = arith.negf %57 : vector<2x64xf32>
    %59 = math.exp %58 : vector<2x64xf32>
    %cst_26 = arith.constant 1.000000e+00 : f32
    %60 = vector.broadcast %cst_26 : f32 to vector<2x64xf32>
    %61 = arith.addf %60, %59 : vector<2x64xf32>
    %62 = arith.divf %60, %61 : vector<2x64xf32>
    %63 = vector.extract_strided_slice %50 {offsets = [0, 128], sizes = [2, 64], strides = [1, 1]} : vector<2x256xf32> to vector<2x64xf32>
    %64 = math.tanh %63 : vector<2x64xf32>
    %65 = vector.extract_strided_slice %50 {offsets = [0, 192], sizes = [2, 64], strides = [1, 1]} : vector<2x256xf32> to vector<2x64xf32>
    %66 = arith.negf %65 : vector<2x64xf32>
    %67 = math.exp %66 : vector<2x64xf32>
    %cst_27 = arith.constant 1.000000e+00 : f32
    %68 = vector.broadcast %cst_27 : f32 to vector<2x64xf32>
    %69 = arith.addf %68, %67 : vector<2x64xf32>
    %70 = arith.divf %68, %69 : vector<2x64xf32>
    %71 = arith.mulf %62, %39 : vector<2x64xf32>
    %72 = arith.mulf %56, %64 : vector<2x64xf32>
    %73 = arith.addf %71, %72 : vector<2x64xf32>
    %74 = math.tanh %73 : vector<2x64xf32>
    %75 = arith.mulf %70, %74 : vector<2x64xf32>
    %76 = arith.index_cast %c1_i32 : i32 to index
    %c0_28 = arith.constant 0 : index
    %c0_29 = arith.constant 0 : index
    %77 = vector.load %arg8[%76, %c0_28, %c0_29] : memref<8x2x64xf32, #tpu.memory_space<vmem>>, vector<1x2x64xf32>
    %78 = vector.shape_cast %77 : vector<1x2x64xf32> to vector<2x64xf32>
    %79 = vector.shape_cast %75 : vector<2x64xf32> to vector<1x2x64xf32>
    tpu.vector_store %arg8[%76, %c0_28, %c0_29], %79 {strides = array<i32>} : memref<8x2x64xf32, #tpu.memory_space<vmem>>, vector<1x2x64xf32>,
    %c2_i32 = arith.constant 2 : i32
    %80 = arith.index_cast %c2_i32 : i32 to index
    %c0_30 = arith.constant 0 : index
    %c0_31 = arith.constant 0 : index
    %81 = vector.load %arg7[%80, %c0_30, %c0_31] : memref<8x2x256xf32, #tpu.memory_space<vmem>>, vector<1x2x256xf32>
    %82 = vector.shape_cast %81 : vector<1x2x256xf32> to vector<2x256xf32>
    %cst_32 = arith.constant dense<0.000000e+00> : vector<2x256xf32>
    %83 = tpu.matmul %75, %9, %cst_32 {dimension_numbers = #tpu.dot_dimension_numbers<[1], [0], [0], [1], [0, 0, 1, 1], [], []>} : vector<2x64xf32>, vector<64x256xf32>, vector<2x256xf32> -> vector<2x256xf32>
    %84 = arith.addf %82, %83 : vector<2x256xf32>
    %85 = vector.extract_strided_slice %84 {offsets = [0, 0], sizes = [2, 64], strides = [1, 1]} : vector<2x256xf32> to vector<2x64xf32>
    %86 = arith.negf %85 : vector<2x64xf32>
    %87 = math.exp %86 : vector<2x64xf32>
    %cst_33 = arith.constant 1.000000e+00 : f32
    %88 = vector.broadcast %cst_33 : f32 to vector<2x64xf32>
    %89 = arith.addf %88, %87 : vector<2x64xf32>
    %90 = arith.divf %88, %89 : vector<2x64xf32>
    %91 = vector.extract_strided_slice %84 {offsets = [0, 64], sizes = [2, 64], strides = [1, 1]} : vector<2x256xf32> to vector<2x64xf32>
    %92 = arith.negf %91 : vector<2x64xf32>
    %93 = math.exp %92 : vector<2x64xf32>
    %cst_34 = arith.constant 1.000000e+00 : f32
    %94 = vector.broadcast %cst_34 : f32 to vector<2x64xf32>
    %95 = arith.addf %94, %93 : vector<2x64xf32>
    %96 = arith.divf %94, %95 : vector<2x64xf32>
    %97 = vector.extract_strided_slice %84 {offsets = [0, 128], sizes = [2, 64], strides = [1, 1]} : vector<2x256xf32> to vector<2x64xf32>
    %98 = math.tanh %97 : vector<2x64xf32>
    %99 = vector.extract_strided_slice %84 {offsets = [0, 192], sizes = [2, 64], strides = [1, 1]} : vector<2x256xf32> to vector<2x64xf32>
    %100 = arith.negf %99 : vector<2x64xf32>
    %101 = math.exp %100 : vector<2x64xf32>
    %cst_35 = arith.constant 1.000000e+00 : f32
    %102 = vector.broadcast %cst_35 : f32 to vector<2x64xf32>
    %103 = arith.addf %102, %101 : vector<2x64xf32>
    %104 = arith.divf %102, %103 : vector<2x64xf32>
    %105 = arith.mulf %96, %73 : vector<2x64xf32>
    %106 = arith.mulf %90, %98 : vector<2x64xf32>
    %107 = arith.addf %105, %106 : vector<2x64xf32>
    %108 = math.tanh %107 : vector<2x64xf32>
    %109 = arith.mulf %104, %108 : vector<2x64xf32>
    %110 = arith.index_cast %c2_i32 : i32 to index
    %c0_36 = arith.constant 0 : index
    %c0_37 = arith.constant 0 : index
    %111 = vector.load %arg8[%110, %c0_36, %c0_37] : memref<8x2x64xf32, #tpu.memory_space<vmem>>, vector<1x2x64xf32>
    %112 = vector.shape_cast %111 : vector<1x2x64xf32> to vector<2x64xf32>
    %113 = vector.shape_cast %109 : vector<2x64xf32> to vector<1x2x64xf32>
    tpu.vector_store %arg8[%110, %c0_36, %c0_37], %113 {strides = array<i32>} : memref<8x2x64xf32, #tpu.memory_space<vmem>>, vector<1x2x64xf32>,
    %c3_i32 = arith.constant 3 : i32
    %114 = arith.index_cast %c3_i32 : i32 to index
    %c0_38 = arith.constant 0 : index
    %c0_39 = arith.constant 0 : index
    %115 = vector.load %arg7[%114, %c0_38, %c0_39] : memref<8x2x256xf32, #tpu.memory_space<vmem>>, vector<1x2x256xf32>
    %116 = vector.shape_cast %115 : vector<1x2x256xf32> to vector<2x256xf32>
    %cst_40 = arith.constant dense<0.000000e+00> : vector<2x256xf32>
    %117 = tpu.matmul %109, %9, %cst_40 {dimension_numbers = #tpu.dot_dimension_numbers<[1], [0], [0], [1], [0, 0, 1, 1], [], []>} : vector<2x64xf32>, vector<64x256xf32>, vector<2x256xf32> -> vector<2x256xf32>
    %118 = arith.addf %116, %117 : vector<2x256xf32>
    %119 = vector.extract_strided_slice %118 {offsets = [0, 0], sizes = [2, 64], strides = [1, 1]} : vector<2x256xf32> to vector<2x64xf32>
    %120 = arith.negf %119 : vector<2x64xf32>
    %121 = math.exp %120 : vector<2x64xf32>
    %cst_41 = arith.constant 1.000000e+00 : f32
    %122 = vector.broadcast %cst_41 : f32 to vector<2x64xf32>
    %123 = arith.addf %122, %121 : vector<2x64xf32>
    %124 = arith.divf %122, %123 : vector<2x64xf32>
    %125 = vector.extract_strided_slice %118 {offsets = [0, 64], sizes = [2, 64], strides = [1, 1]} : vector<2x256xf32> to vector<2x64xf32>
    %126 = arith.negf %125 : vector<2x64xf32>
    %127 = math.exp %126 : vector<2x64xf32>
    %cst_42 = arith.constant 1.000000e+00 : f32
    %128 = vector.broadcast %cst_42 : f32 to vector<2x64xf32>
    %129 = arith.addf %128, %127 : vector<2x64xf32>
    %130 = arith.divf %128, %129 : vector<2x64xf32>
    %131 = vector.extract_strided_slice %118 {offsets = [0, 128], sizes = [2, 64], strides = [1, 1]} : vector<2x256xf32> to vector<2x64xf32>
    %132 = math.tanh %131 : vector<2x64xf32>
    %133 = vector.extract_strided_slice %118 {offsets = [0, 192], sizes = [2, 64], strides = [1, 1]} : vector<2x256xf32> to vector<2x64xf32>
    %134 = arith.negf %133 : vector<2x64xf32>
    %135 = math.exp %134 : vector<2x64xf32>
    %cst_43 = arith.constant 1.000000e+00 : f32
    %136 = vector.broadcast %cst_43 : f32 to vector<2x64xf32>
    %137 = arith.addf %136, %135 : vector<2x64xf32>
    %138 = arith.divf %136, %137 : vector<2x64xf32>
    %139 = arith.mulf %130, %107 : vector<2x64xf32>
    %140 = arith.mulf %124, %132 : vector<2x64xf32>
    %141 = arith.addf %139, %140 : vector<2x64xf32>
    %142 = math.tanh %141 : vector<2x64xf32>
    %143 = arith.mulf %138, %142 : vector<2x64xf32>
    %144 = arith.index_cast %c3_i32 : i32 to index
    %c0_44 = arith.constant 0 : index
    %c0_45 = arith.constant 0 : index
    %145 = vector.load %arg8[%144, %c0_44, %c0_45] : memref<8x2x64xf32, #tpu.memory_space<vmem>>, vector<1x2x64xf32>
    %146 = vector.shape_cast %145 : vector<1x2x64xf32> to vector<2x64xf32>
    %147 = vector.shape_cast %143 : vector<2x64xf32> to vector<1x2x64xf32>
    tpu.vector_store %arg8[%144, %c0_44, %c0_45], %147 {strides = array<i32>} : memref<8x2x64xf32, #tpu.memory_space<vmem>>, vector<1x2x64xf32>,
    %c4_i32 = arith.constant 4 : i32
    %148 = arith.index_cast %c4_i32 : i32 to index
    %c0_46 = arith.constant 0 : index
    %c0_47 = arith.constant 0 : index
    %149 = vector.load %arg7[%148, %c0_46, %c0_47] : memref<8x2x256xf32, #tpu.memory_space<vmem>>, vector<1x2x256xf32>
    %150 = vector.shape_cast %149 : vector<1x2x256xf32> to vector<2x256xf32>
    %cst_48 = arith.constant dense<0.000000e+00> : vector<2x256xf32>
    %151 = tpu.matmul %143, %9, %cst_48 {dimension_numbers = #tpu.dot_dimension_numbers<[1], [0], [0], [1], [0, 0, 1, 1], [], []>} : vector<2x64xf32>, vector<64x256xf32>, vector<2x256xf32> -> vector<2x256xf32>
    %152 = arith.addf %150, %151 : vector<2x256xf32>
    %153 = vector.extract_strided_slice %152 {offsets = [0, 0], sizes = [2, 64], strides = [1, 1]} : vector<2x256xf32> to vector<2x64xf32>
    %154 = arith.negf %153 : vector<2x64xf32>
    %155 = math.exp %154 : vector<2x64xf32>
    %cst_49 = arith.constant 1.000000e+00 : f32
    %156 = vector.broadcast %cst_49 : f32 to vector<2x64xf32>
    %157 = arith.addf %156, %155 : vector<2x64xf32>
    %158 = arith.divf %156, %157 : vector<2x64xf32>
    %159 = vector.extract_strided_slice %152 {offsets = [0, 64], sizes = [2, 64], strides = [1, 1]} : vector<2x256xf32> to vector<2x64xf32>
    %160 = arith.negf %159 : vector<2x64xf32>
    %161 = math.exp %160 : vector<2x64xf32>
    %cst_50 = arith.constant 1.000000e+00 : f32
    %162 = vector.broadcast %cst_50 : f32 to vector<2x64xf32>
    %163 = arith.addf %162, %161 : vector<2x64xf32>
    %164 = arith.divf %162, %163 : vector<2x64xf32>
    %165 = vector.extract_strided_slice %152 {offsets = [0, 128], sizes = [2, 64], strides = [1, 1]} : vector<2x256xf32> to vector<2x64xf32>
    %166 = math.tanh %165 : vector<2x64xf32>
    %167 = vector.extract_strided_slice %152 {offsets = [0, 192], sizes = [2, 64], strides = [1, 1]} : vector<2x256xf32> to vector<2x64xf32>
    %168 = arith.negf %167 : vector<2x64xf32>
    %169 = math.exp %168 : vector<2x64xf32>
    %cst_51 = arith.constant 1.000000e+00 : f32
    %170 = vector.broadcast %cst_51 : f32 to vector<2x64xf32>
    %171 = arith.addf %170, %169 : vector<2x64xf32>
    %172 = arith.divf %170, %171 : vector<2x64xf32>
    %173 = arith.mulf %164, %141 : vector<2x64xf32>
    %174 = arith.mulf %158, %166 : vector<2x64xf32>
    %175 = arith.addf %173, %174 : vector<2x64xf32>
    %176 = math.tanh %175 : vector<2x64xf32>
    %177 = arith.mulf %172, %176 : vector<2x64xf32>
    %178 = arith.index_cast %c4_i32 : i32 to index
    %c0_52 = arith.constant 0 : index
    %c0_53 = arith.constant 0 : index
    %179 = vector.load %arg8[%178, %c0_52, %c0_53] : memref<8x2x64xf32, #tpu.memory_space<vmem>>, vector<1x2x64xf32>
    %180 = vector.shape_cast %179 : vector<1x2x64xf32> to vector<2x64xf32>
    %181 = vector.shape_cast %177 : vector<2x64xf32> to vector<1x2x64xf32>
    tpu.vector_store %arg8[%178, %c0_52, %c0_53], %181 {strides = array<i32>} : memref<8x2x64xf32, #tpu.memory_space<vmem>>, vector<1x2x64xf32>,
    %c5_i32 = arith.constant 5 : i32
    %182 = arith.index_cast %c5_i32 : i32 to index
    %c0_54 = arith.constant 0 : index
    %c0_55 = arith.constant 0 : index
    %183 = vector.load %arg7[%182, %c0_54, %c0_55] : memref<8x2x256xf32, #tpu.memory_space<vmem>>, vector<1x2x256xf32>
    %184 = vector.shape_cast %183 : vector<1x2x256xf32> to vector<2x256xf32>
    %cst_56 = arith.constant dense<0.000000e+00> : vector<2x256xf32>
    %185 = tpu.matmul %177, %9, %cst_56 {dimension_numbers = #tpu.dot_dimension_numbers<[1], [0], [0], [1], [0, 0, 1, 1], [], []>} : vector<2x64xf32>, vector<64x256xf32>, vector<2x256xf32> -> vector<2x256xf32>
    %186 = arith.addf %184, %185 : vector<2x256xf32>
    %187 = vector.extract_strided_slice %186 {offsets = [0, 0], sizes = [2, 64], strides = [1, 1]} : vector<2x256xf32> to vector<2x64xf32>
    %188 = arith.negf %187 : vector<2x64xf32>
    %189 = math.exp %188 : vector<2x64xf32>
    %cst_57 = arith.constant 1.000000e+00 : f32
    %190 = vector.broadcast %cst_57 : f32 to vector<2x64xf32>
    %191 = arith.addf %190, %189 : vector<2x64xf32>
    %192 = arith.divf %190, %191 : vector<2x64xf32>
    %193 = vector.extract_strided_slice %186 {offsets = [0, 64], sizes = [2, 64], strides = [1, 1]} : vector<2x256xf32> to vector<2x64xf32>
    %194 = arith.negf %193 : vector<2x64xf32>
    %195 = math.exp %194 : vector<2x64xf32>
    %cst_58 = arith.constant 1.000000e+00 : f32
    %196 = vector.broadcast %cst_58 : f32 to vector<2x64xf32>
    %197 = arith.addf %196, %195 : vector<2x64xf32>
    %198 = arith.divf %196, %197 : vector<2x64xf32>
    %199 = vector.extract_strided_slice %186 {offsets = [0, 128], sizes = [2, 64], strides = [1, 1]} : vector<2x256xf32> to vector<2x64xf32>
    %200 = math.tanh %199 : vector<2x64xf32>
    %201 = vector.extract_strided_slice %186 {offsets = [0, 192], sizes = [2, 64], strides = [1, 1]} : vector<2x256xf32> to vector<2x64xf32>
    %202 = arith.negf %201 : vector<2x64xf32>
    %203 = math.exp %202 : vector<2x64xf32>
    %cst_59 = arith.constant 1.000000e+00 : f32
    %204 = vector.broadcast %cst_59 : f32 to vector<2x64xf32>
    %205 = arith.addf %204, %203 : vector<2x64xf32>
    %206 = arith.divf %204, %205 : vector<2x64xf32>
    %207 = arith.mulf %198, %175 : vector<2x64xf32>
    %208 = arith.mulf %192, %200 : vector<2x64xf32>
    %209 = arith.addf %207, %208 : vector<2x64xf32>
    %210 = math.tanh %209 : vector<2x64xf32>
    %211 = arith.mulf %206, %210 : vector<2x64xf32>
    %212 = arith.index_cast %c5_i32 : i32 to index
    %c0_60 = arith.constant 0 : index
    %c0_61 = arith.constant 0 : index
    %213 = vector.load %arg8[%212, %c0_60, %c0_61] : memref<8x2x64xf32, #tpu.memory_space<vmem>>, vector<1x2x64xf32>
    %214 = vector.shape_cast %213 : vector<1x2x64xf32> to vector<2x64xf32>
    %215 = vector.shape_cast %211 : vector<2x64xf32> to vector<1x2x64xf32>
    tpu.vector_store %arg8[%212, %c0_60, %c0_61], %215 {strides = array<i32>} : memref<8x2x64xf32, #tpu.memory_space<vmem>>, vector<1x2x64xf32>,
    %c6_i32 = arith.constant 6 : i32
    %216 = arith.index_cast %c6_i32 : i32 to index
    %c0_62 = arith.constant 0 : index
    %c0_63 = arith.constant 0 : index
    %217 = vector.load %arg7[%216, %c0_62, %c0_63] : memref<8x2x256xf32, #tpu.memory_space<vmem>>, vector<1x2x256xf32>
    %218 = vector.shape_cast %217 : vector<1x2x256xf32> to vector<2x256xf32>
    %cst_64 = arith.constant dense<0.000000e+00> : vector<2x256xf32>
    %219 = tpu.matmul %211, %9, %cst_64 {dimension_numbers = #tpu.dot_dimension_numbers<[1], [0], [0], [1], [0, 0, 1, 1], [], []>} : vector<2x64xf32>, vector<64x256xf32>, vector<2x256xf32> -> vector<2x256xf32>
    %220 = arith.addf %218, %219 : vector<2x256xf32>
    %221 = vector.extract_strided_slice %220 {offsets = [0, 0], sizes = [2, 64], strides = [1, 1]} : vector<2x256xf32> to vector<2x64xf32>
    %222 = arith.negf %221 : vector<2x64xf32>
    %223 = math.exp %222 : vector<2x64xf32>
    %cst_65 = arith.constant 1.000000e+00 : f32
    %224 = vector.broadcast %cst_65 : f32 to vector<2x64xf32>
    %225 = arith.addf %224, %223 : vector<2x64xf32>
    %226 = arith.divf %224, %225 : vector<2x64xf32>
    %227 = vector.extract_strided_slice %220 {offsets = [0, 64], sizes = [2, 64], strides = [1, 1]} : vector<2x256xf32> to vector<2x64xf32>
    %228 = arith.negf %227 : vector<2x64xf32>
    %229 = math.exp %228 : vector<2x64xf32>
    %cst_66 = arith.constant 1.000000e+00 : f32
    %230 = vector.broadcast %cst_66 : f32 to vector<2x64xf32>
    %231 = arith.addf %230, %229 : vector<2x64xf32>
    %232 = arith.divf %230, %231 : vector<2x64xf32>
    %233 = vector.extract_strided_slice %220 {offsets = [0, 128], sizes = [2, 64], strides = [1, 1]} : vector<2x256xf32> to vector<2x64xf32>
    %234 = math.tanh %233 : vector<2x64xf32>
    %235 = vector.extract_strided_slice %220 {offsets = [0, 192], sizes = [2, 64], strides = [1, 1]} : vector<2x256xf32> to vector<2x64xf32>
    %236 = arith.negf %235 : vector<2x64xf32>
    %237 = math.exp %236 : vector<2x64xf32>
    %cst_67 = arith.constant 1.000000e+00 : f32
    %238 = vector.broadcast %cst_67 : f32 to vector<2x64xf32>
    %239 = arith.addf %238, %237 : vector<2x64xf32>
    %240 = arith.divf %238, %239 : vector<2x64xf32>
    %241 = arith.mulf %232, %209 : vector<2x64xf32>
    %242 = arith.mulf %226, %234 : vector<2x64xf32>
    %243 = arith.addf %241, %242 : vector<2x64xf32>
    %244 = math.tanh %243 : vector<2x64xf32>
    %245 = arith.mulf %240, %244 : vector<2x64xf32>
    %246 = arith.index_cast %c6_i32 : i32 to index
    %c0_68 = arith.constant 0 : index
    %c0_69 = arith.constant 0 : index
    %247 = vector.load %arg8[%246, %c0_68, %c0_69] : memref<8x2x64xf32, #tpu.memory_space<vmem>>, vector<1x2x64xf32>
    %248 = vector.shape_cast %247 : vector<1x2x64xf32> to vector<2x64xf32>
    %249 = vector.shape_cast %245 : vector<2x64xf32> to vector<1x2x64xf32>
    tpu.vector_store %arg8[%246, %c0_68, %c0_69], %249 {strides = array<i32>} : memref<8x2x64xf32, #tpu.memory_space<vmem>>, vector<1x2x64xf32>,
    %c7_i32 = arith.constant 7 : i32
    %250 = arith.index_cast %c7_i32 : i32 to index
    %c0_70 = arith.constant 0 : index
    %c0_71 = arith.constant 0 : index
    %251 = vector.load %arg7[%250, %c0_70, %c0_71] : memref<8x2x256xf32, #tpu.memory_space<vmem>>, vector<1x2x256xf32>
    %252 = vector.shape_cast %251 : vector<1x2x256xf32> to vector<2x256xf32>
    %cst_72 = arith.constant dense<0.000000e+00> : vector<2x256xf32>
    %253 = tpu.matmul %245, %9, %cst_72 {dimension_numbers = #tpu.dot_dimension_numbers<[1], [0], [0], [1], [0, 0, 1, 1], [], []>} : vector<2x64xf32>, vector<64x256xf32>, vector<2x256xf32> -> vector<2x256xf32>
    %254 = arith.addf %252, %253 : vector<2x256xf32>
    %255 = vector.extract_strided_slice %254 {offsets = [0, 0], sizes = [2, 64], strides = [1, 1]} : vector<2x256xf32> to vector<2x64xf32>
    %256 = arith.negf %255 : vector<2x64xf32>
    %257 = math.exp %256 : vector<2x64xf32>
    %cst_73 = arith.constant 1.000000e+00 : f32
    %258 = vector.broadcast %cst_73 : f32 to vector<2x64xf32>
    %259 = arith.addf %258, %257 : vector<2x64xf32>
    %260 = arith.divf %258, %259 : vector<2x64xf32>
    %261 = vector.extract_strided_slice %254 {offsets = [0, 64], sizes = [2, 64], strides = [1, 1]} : vector<2x256xf32> to vector<2x64xf32>
    %262 = arith.negf %261 : vector<2x64xf32>
    %263 = math.exp %262 : vector<2x64xf32>
    %cst_74 = arith.constant 1.000000e+00 : f32
    %264 = vector.broadcast %cst_74 : f32 to vector<2x64xf32>
    %265 = arith.addf %264, %263 : vector<2x64xf32>
    %266 = arith.divf %264, %265 : vector<2x64xf32>
    %267 = vector.extract_strided_slice %254 {offsets = [0, 128], sizes = [2, 64], strides = [1, 1]} : vector<2x256xf32> to vector<2x64xf32>
    %268 = math.tanh %267 : vector<2x64xf32>
    %269 = vector.extract_strided_slice %254 {offsets = [0, 192], sizes = [2, 64], strides = [1, 1]} : vector<2x256xf32> to vector<2x64xf32>
    %270 = arith.negf %269 : vector<2x64xf32>
    %271 = math.exp %270 : vector<2x64xf32>
    %cst_75 = arith.constant 1.000000e+00 : f32
    %272 = vector.broadcast %cst_75 : f32 to vector<2x64xf32>
    %273 = arith.addf %272, %271 : vector<2x64xf32>
    %274 = arith.divf %272, %273 : vector<2x64xf32>
    %275 = arith.mulf %266, %243 : vector<2x64xf32>
    %276 = arith.mulf %260, %268 : vector<2x64xf32>
    %277 = arith.addf %275, %276 : vector<2x64xf32>
    %278 = math.tanh %277 : vector<2x64xf32>
    %279 = arith.mulf %274, %278 : vector<2x64xf32>
    %280 = arith.index_cast %c7_i32 : i32 to index
    %c0_76 = arith.constant 0 : index
    %c0_77 = arith.constant 0 : index
    %281 = vector.load %arg8[%280, %c0_76, %c0_77] : memref<8x2x64xf32, #tpu.memory_space<vmem>>, vector<1x2x64xf32>
    %282 = vector.shape_cast %281 : vector<1x2x64xf32> to vector<2x64xf32>
    %283 = vector.shape_cast %279 : vector<2x64xf32> to vector<1x2x64xf32>
    tpu.vector_store %arg8[%280, %c0_76, %c0_77], %283 {strides = array<i32>} : memref<8x2x64xf32, #tpu.memory_space<vmem>>, vector<1x2x64xf32>,
    %c8_i32 = arith.constant 8 : i32
    %c0_78 = arith.constant 0 : index
    %c0_79 = arith.constant 0 : index
    %c0_80 = arith.constant 0 : index
    %284 = vector.load %arg8[%c0_78, %c0_79, %c0_80] : memref<8x2x64xf32, #tpu.memory_space<vmem>>, vector<8x2x64xf32>
    %c0_81 = arith.constant 0 : index
    %c0_82 = arith.constant 0 : index
    %285 = vector.load %arg4[%c0_81, %c0_82] : memref<1x64xf32, #tpu.memory_space<vmem>>, vector<1x64xf32>
    %286 = vector.shape_cast %285 : vector<1x64xf32> to vector<1x1x64xf32>
    %287 = vector.broadcast %286 : vector<1x1x64xf32> to vector<8x2x64xf32>
    %288 = arith.mulf %284, %287 : vector<8x2x64xf32>
    %cst_83 = arith.constant dense<0.000000e+00> : vector<8x2xf32>
    %289 = vector.multi_reduction <add>, %288, %cst_83 [2] : vector<8x2x64xf32> to vector<8x2xf32>
    %c0_84 = arith.constant 0 : index
    %c0_85 = arith.constant 0 : index
    %290 = memref.load %arg5[%c0_84, %c0_85] : memref<1x1xf32, #tpu.memory_space<smem>>
    %291 = vector.broadcast %290 : f32 to vector<8x2xf32>
    %292 = arith.addf %289, %291 : vector<8x2xf32>
    %c0_86 = arith.constant 0 : index
    %c0_87 = arith.constant 0 : index
    %293 = vector.load %arg6[%c0_86, %c0_87] : memref<8x2xf32, #tpu.memory_space<vmem>>, vector<8x2xf32>
    tpu.vector_store %arg6[%c0_86, %c0_87], %292 {strides = array<i32>} : memref<8x2xf32, #tpu.memory_space<vmem>>, vector<8x2xf32>,
    return
  }
}

</mosaic_0001>

<llo_original>
// kernel: tpu_custom_call.1
$region0: #{tpu_custom_call.1}
  #allocation0 [shape = 'u32[]', space=smem, size = 0x4, offset = 0x4, fixed_abs, tag = 'smem constant byte address 0x4 - core index']
  #allocation1 [shape = 'u32[72,128]{1,0:T(1,128)}', space=vmem, size = 0x9000, scoped, tag = 'internal scratch']
  #allocation2 [shape = 'f32[8,2,256]{2,1,0:T(2,128)}', space=vmem, size = 0x4000, scoped, tag = 'scratch operand']
  #allocation3 [shape = 'f32[8,2,64]{2,1,0:T(2,128)}', space=vmem, size = 0x2000, scoped, tag = 'scratch operand']
  #allocation4 [shape = 'f32[1,1]{1,0:T(1,128)S(6)}', space=smem, size = 0x200, scoped, tag = 'scoped memory for tpu_custom_call.1']
  %s0 = inlined_call_operand.vmem [shape: f32[8,2,1], index: 0, kind: input, shape index: {}]
  %s1 = inlined_call_operand.vmem [shape: f32[1,1,256], index: 1, kind: input, shape index: {}]
  %s2 = inlined_call_operand.hbm [shape: f32[64,256], index: 2, kind: input, shape index: {}]
  %s3 = inlined_call_operand.vmem [shape: f32[1,1,256], index: 3, kind: input, shape index: {}]
  %s4 = inlined_call_operand.vmem [shape: f32[1,64], index: 4, kind: input, shape index: {}]
  %s5 = inlined_call_operand.<no memory space> [shape: f32[1,1], index: 5, kind: input, shape index: {}]
  %s6 = inlined_call_operand.vmem [shape: f32[8,2], index: 6, kind: output, shape index: {}]
  %s7 = sld [smem:[#allocation0]]
  $region38: #{tpu_custom_call.1} parent=0
    _
  %s9 = ssub.s32 1, %s7
  %s10 = scalar_select 0, %s9, %s7
  %11 = sst [smem:[#allocation4]] %s5
  $region1: #{tpu_custom_call.1} parent=0
    #allocation5 [shape = 'u8[65536]{0}', space=vmem, size = 0x10000, scoped, tag = 'input window, operand 2, single buffered']
    #allocation6 [shape = 's32[1]{0}', space=sflag, size = 0x4, scoped, tag = 'scoped memory for tpu_custom_call.1']
    %12 = vsyncpa [#allocation6], 0
    // Predicated region
    $region2: #{tpu_custom_call.1} parent=1 // pred_check
      _
    $region3: #{tpu_custom_call.1} parent=1 // pred_check_branch
      %14 = sbr.rel (0) target = $region5
    $region4: #{tpu_custom_call.1} parent=1 // pred_region
      _
    $region5: #{tpu_custom_call.1} parent=1 // pred_fallthru
      _
    // Predicated region
    $region6: #{tpu_custom_call.1} parent=1 // pred_check
      _
    $region7: #{tpu_custom_call.1} parent=1 // pred_check_branch
      %16 = sbr.rel (0) target = $region9
    $region8: #{tpu_custom_call.1} parent=1 // pred_region
      _
    $region9: #{tpu_custom_call.1} parent=1 // pred_fallthru
      _
    // Predicated region
    $region10: #{tpu_custom_call.1} parent=1 // pred_check
      _
    $region11: #{tpu_custom_call.1} parent=1 // pred_check_branch
      %18 = sbr.rel (0) target = $region13
    $region12: #{tpu_custom_call.1} parent=1 // pred_region
      %20 = vsyncadd [#allocation6], 0
      %s21 = sshll.u32 %s2, 4
      %s22 = int_to_ptr.hbm [resolvable:$true] %s21
      %s23 = sshll.u32 [#allocation5], 4
      %s24 = int_to_ptr.vmem [resolvable:$true] %s23
      %29 = dma.hbm_to_vmem [thread:$0]  %s22, 2048, %s24, [#allocation6], 256, 256, 16
    $region13: #{tpu_custom_call.1} parent=1 // pred_fallthru
      _
    // Predicated region
    $region14: #{tpu_custom_call.1} parent=1 // pred_check
      _
    $region15: #{tpu_custom_call.1} parent=1 // pred_check_branch
      %31 = sbr.rel (0) target = $region17
    $region16: #{tpu_custom_call.1} parent=1 // pred_region
      _
    $region17: #{tpu_custom_call.1} parent=1 // pred_fallthru
      _
    // Predicated region
    $region18: #{tpu_custom_call.1} parent=1 // pred_check
      _
    $region19: #{tpu_custom_call.1} parent=1 // pred_check_branch
      %33 = sbr.rel (0) target = $region21
    $region20: #{tpu_custom_call.1} parent=1 // pred_region
      _
    $region21: #{tpu_custom_call.1} parent=1 // pred_fallthru
      _
    // Predicated region
    $region22: #{tpu_custom_call.1} parent=1 // pred_check
      _
    $region23: #{tpu_custom_call.1} parent=1 // pred_check_branch
      %35 = sbr.rel (0) target = $region25
    $region24: #{tpu_custom_call.1} parent=1 // pred_region
      _
    $region25: #{tpu_custom_call.1} parent=1 // pred_fallthru
      _
    // Predicated region
    $region26: #{tpu_custom_call.1} parent=1 // pred_check
      _
    $region27: #{tpu_custom_call.1} parent=1 // pred_check_branch
      %37 = sbr.rel (0) target = $region29
    $region28: #{tpu_custom_call.1} parent=1 // pred_region
      %39 = dma.done [#allocation6], 2048
    $region29: #{tpu_custom_call.1} parent=1 // pred_fallthru
      _
    %v40 = vld [vmem:[%s0] sm:$0x3]
    %v41 = vld [vmem:[%s0 + $0x2] sm:$0x3]
    %v42 = vld [vmem:[%s0 + $0x4] sm:$0x3]
    %v43 = vld [vmem:[%s0 + $0x6] sm:$0x3]
    %v44 = vld [vmem:[%s0 + $0x8] sm:$0x3]
    %v45 = vld [vmem:[%s0 + $0xa] sm:$0x3]
    %v46 = vld [vmem:[%s0 + $0xc] sm:$0x3]
    %v47 = vld [vmem:[%s0 + $0xe] sm:$0x3]
    %v48 = vld [vmem:[%s1] sm:$0x3]
    %50 = vset.pattern.permute.xlu0 0
    %51 = vperm.xlu0 %50, %v40
    %v52 = vpop.permute.xlu0 %51
    %55 = vset.pattern.permute.xlu0 0
    %56 = vperm.xlu0 %55, %v41
    %v57 = vpop.permute.xlu0 %56
    %60 = vset.pattern.permute.xlu0 0
    %61 = vperm.xlu0 %60, %v42
    %v62 = vpop.permute.xlu0 %61
    %65 = vset.pattern.permute.xlu0 0
    %66 = vperm.xlu0 %65, %v43
    %v67 = vpop.permute.xlu0 %66
    %70 = vset.pattern.permute.xlu0 0
    %71 = vperm.xlu0 %70, %v44
    %v72 = vpop.permute.xlu0 %71
    %75 = vset.pattern.permute.xlu0 0
    %76 = vperm.xlu0 %75, %v45
    %v77 = vpop.permute.xlu0 %76
    %80 = vset.pattern.permute.xlu0 0
    %81 = vperm.xlu0 %80, %v46
    %v82 = vpop.permute.xlu0 %81
    %85 = vset.pattern.permute.xlu0 0
    %86 = vperm.xlu0 %85, %v47
    %v87 = vpop.permute.xlu0 %86
    %v90 = vperm.slane %v48, 0
    %v91 = vperm.slane %v48, 1
    %v94 = vmul.f32 %v52, %v90
    %v95 = vmul.f32 %v52, %v91
    %v96 = vmul.f32 %v57, %v90
    %v97 = vmul.f32 %v57, %v91
    %v98 = vmul.f32 %v62, %v90
    %v99 = vmul.f32 %v62, %v91
    %v100 = vmul.f32 %v67, %v90
    %v101 = vmul.f32 %v67, %v91
    %v102 = vmul.f32 %v72, %v90
    %v103 = vmul.f32 %v72, %v91
    %v104 = vmul.f32 %v77, %v90
    %v105 = vmul.f32 %v77, %v91
    %v106 = vmul.f32 %v82, %v90
    %v107 = vmul.f32 %v82, %v91
    %v108 = vmul.f32 %v87, %v90
    %v109 = vmul.f32 %v87, %v91
    %v110 = vld [vmem:[%s3] sm:$0x3]
    %v112 = vperm.slane %v110, 0
    %v113 = vperm.slane %v110, 1
    %v116 = vadd.f32 %v94, %v112
    %v117 = vadd.f32 %v95, %v113
    %v118 = vadd.f32 %v96, %v112
    %v119 = vadd.f32 %v97, %v113
    %v120 = vadd.f32 %v98, %v112
    %v121 = vadd.f32 %v99, %v113
    %v122 = vadd.f32 %v100, %v112
    %v123 = vadd.f32 %v101, %v113
    %v124 = vadd.f32 %v102, %v112
    %v125 = vadd.f32 %v103, %v113
    %v126 = vadd.f32 %v104, %v112
    %v127 = vadd.f32 %v105, %v113
    %v128 = vadd.f32 %v106, %v112
    %v129 = vadd.f32 %v107, %v113
    %v130 = vadd.f32 %v108, %v112
    %v131 = vadd.f32 %v109, %v113
    %v148 = vrot.slane %v117, 6
    %v149 = vrot.slane %v119, 6
    %v150 = vrot.slane %v121, 6
    %v151 = vrot.slane %v123, 6
    %v152 = vrot.slane %v125, 6
    %v153 = vrot.slane %v127, 6
    %v154 = vrot.slane %v129, 6
    %v155 = vrot.slane %v131, 6
    %vm156 = vcmask 1041408
    %v157 = vsel %vm156, %v116, %v148
    %v158 = vsel %vm156, %v118, %v149
    %v159 = vsel %vm156, %v120, %v150
    %v160 = vsel %vm156, %v122, %v151
    %v161 = vsel %vm156, %v124, %v152
    %v162 = vsel %vm156, %v126, %v153
    %v163 = vsel %vm156, %v128, %v154
    %v164 = vsel %vm156, %v130, %v155
    %173 = vst [vmem:[#allocation2] sm:$0xf] %v157
    %174 = vst [vmem:[#allocation2 + $0x4] sm:$0xf] %v158
    %175 = vst [vmem:[#allocation2 + $0x8] sm:$0xf] %v159
    %176 = vst [vmem:[#allocation2 + $0xc] sm:$0xf] %v160
    %177 = vst [vmem:[#allocation2 + $0x10] sm:$0xf] %v161
    %178 = vst [vmem:[#allocation2 + $0x14] sm:$0xf] %v162
    %179 = vst [vmem:[#allocation2 + $0x18] sm:$0xf] %v163
    %180 = vst [vmem:[#allocation2 + $0x1c] sm:$0xf] %v164
    %v181 = vld [vmem:[#allocation5] sm:$0xff]
    %v182 = vld [vmem:[#allocation5 + $0x8] sm:$0xff]
    %v183 = vld [vmem:[#allocation5 + $0x10] sm:$0xff]
    %v184 = vld [vmem:[#allocation5 + $0x18] sm:$0xff]
    %v185 = vld [vmem:[#allocation5 + $0x20] sm:$0xff]
    %v186 = vld [vmem:[#allocation5 + $0x28] sm:$0xff]
    %v187 = vld [vmem:[#allocation5 + $0x30] sm:$0xff]
    %v188 = vld [vmem:[#allocation5 + $0x38] sm:$0xff]
    %v189 = vld [vmem:[#allocation5 + $0x40] sm:$0xff]
    %v190 = vld [vmem:[#allocation5 + $0x48] sm:$0xff]
    %v191 = vld [vmem:[#allocation5 + $0x50] sm:$0xff]
    %v192 = vld [vmem:[#allocation5 + $0x58] sm:$0xff]
    %v193 = vld [vmem:[#allocation5 + $0x60] sm:$0xff]
    %v194 = vld [vmem:[#allocation5 + $0x68] sm:$0xff]
    %v195 = vld [vmem:[#allocation5 + $0x70] sm:$0xff]
    %v196 = vld [vmem:[#allocation5 + $0x78] sm:$0xff]
    %v197 = vld [vmem:[#allocation2] sm:$0xf]
    %vm198 = vcmask 523264
    %v200 = vsel %vm198, 0.0, 0
    %202 = vmatpush.msra.mxu0 0.0
    %203 = vmatpush.msra.mxu0 0.0
    %204 = vmatpush.msra.mxu0 0.0
    %205 = vmatpush.msra.mxu0 0.0
    %206 = vmatpush.msra.mxu0 0.0
    %207 = vmatpush.msra.mxu0 0.0
    %208 = vmatpush.msra.mxu0 0.0
    %209 = vmatpush.msra.mxu0 0.0
    %210 = vmatpush.msra.mxu0 %v195
    %211 = vmatpush.msra.mxu0 %v193
    %212 = vmatpush.msra.mxu0 %v191
    %213 = vmatpush.msra.mxu0 %v189
    %214 = vmatpush.msra.mxu0 %v187
    %215 = vmatpush.msra.mxu0 %v185
    %216 = vmatpush.msra.mxu0 %v183
    %217 = vmatpush.msra.mxu0 %v181
    %218 = vmatmul.f32.gmra.mxu0 %v200
    %v219 = vpop.f32.mrf.mxu0
    %v220 = vadd.f32 0.0, %v219
    %221 = vdwg.mxu0
    %222 = vmatpush.msra.mxu0 0.0
    %223 = vmatpush.msra.mxu0 0.0
    %224 = vmatpush.msra.mxu0 0.0
    %225 = vmatpush.msra.mxu0 0.0
    %226 = vmatpush.msra.mxu0 0.0
    %227 = vmatpush.msra.mxu0 0.0
    %228 = vmatpush.msra.mxu0 0.0
    %229 = vmatpush.msra.mxu0 0.0
    %230 = vmatpush.msra.mxu0 %v196
    %231 = vmatpush.msra.mxu0 %v194
    %232 = vmatpush.msra.mxu0 %v192
    %233 = vmatpush.msra.mxu0 %v190
    %234 = vmatpush.msra.mxu0 %v188
    %235 = vmatpush.msra.mxu0 %v186
    %236 = vmatpush.msra.mxu0 %v184
    %237 = vmatpush.msra.mxu0 %v182
    %238 = vmatmul.f32.gmra.mxu0 %v200
    %v239 = vpop.f32.mrf.mxu0
    %v240 = vadd.f32 0.0, %v239
    %241 = vdwg.mxu0
    %v244 = vrot.slane %v240, 6
    %v245 = vsel %vm156, %v220, %v244
    %v247 = vadd.f32 %v197, %v245
    %v248 = vxor.u32 %v247, 2147483648
    %v249 = vmul.f32 %v248, 1.442695
    %v250 = vpow.pop %v249
    %v251 = vadd.f32 %v250, 1.0
    %v252 = vrcp.pop %v251
    %v253 = vmul.f32 %v251, %v252
    %v254 = vsub.f32 1.0, %v253
    %v255 = vmul.f32 %v252, %v254
    %v256 = vadd.f32 %v252, %v255
    %vm257 = vweird.f32 %v251
    %vm258 = vweird.f32 %v252
    %vm259 = vmor %vm257, %vm258
    %v260 = vsel %vm259, %v252, %v256
    %v261 = vand.u32 2147483647, %v251
    %vm262 = vcmp.eq.f32.partialorder %v261, 8.507059e+37
    %v263 = vand.u32 %v251, 2147483648
    %v264 = vor.u32 1.1754944e-38, %v263
    %v265 = vsel %vm262, %v264, %v260
    %v266 = vmul.f32 1.0, %v265
    %v268 = vrot.slane %v247, 2
    %v270 = vtanh.pop %v268
    %271 = vrot.lane.b32.xlu0 %v247, 64
    %v272 = vpop.permute.xlu0 %271
    %v273 = vrot.slane %v272, 2
    %v275 = vxor.u32 %v273, 2147483648
    %v276 = vmul.f32 %v275, 1.442695
    %v277 = vpow.pop %v276
    %v278 = vadd.f32 %v277, 1.0
    %v279 = vrcp.pop %v278
    %v280 = vmul.f32 %v278, %v279
    %v281 = vsub.f32 1.0, %v280
    %v282 = vmul.f32 %v279, %v281
    %v283 = vadd.f32 %v279, %v282
    %vm284 = vweird.f32 %v278
    %vm285 = vweird.f32 %v279
    %vm286 = vmor %vm284, %vm285
    %v287 = vsel %vm286, %v279, %v283
    %v288 = vand.u32 2147483647, %v278
    %vm289 = vcmp.eq.f32.partialorder %v288, 8.507059e+37
    %v290 = vand.u32 %v278, 2147483648
    %v291 = vor.u32 1.1754944e-38, %v290
    %v292 = vsel %vm289, %v291, %v287
    %v293 = vmul.f32 1.0, %v292
    %v294 = vmul.f32 %v266, 0.0
    %v295 = vmul.f32 %v266, %v270
    %297 = vrot.lane.b32.xlu0 %v295, 64
    %v298 = vpop.permute.xlu0 %297
    %v300 = vadd.f32 %v294, %v298
    %v301 = vtanh.pop %v300
    %303 = vrot.lane.b32.xlu0 %v301, 64
    %v304 = vpop.permute.xlu0 %303
    %v306 = vmul.f32 %v293, %v304
    %vm307 = vcmask 517120
    %308 = vst.msk [vmem:[#allocation3] sm:$0x3] %vm307, %v306
    %s309 = scalar_lea.vmem [#allocation2], 4
    %v310 = vld [vmem:[%s309] sm:$0xf]
    %v312 = vsel %vm198, %v306, 0
    %314 = vmatpush.msra.mxu0 0.0
    %315 = vmatpush.msra.mxu0 0.0
    %316 = vmatpush.msra.mxu0 0.0
    %317 = vmatpush.msra.mxu0 0.0
    %318 = vmatpush.msra.mxu0 0.0
    %319 = vmatpush.msra.mxu0 0.0
    %320 = vmatpush.msra.mxu0 0.0
    %321 = vmatpush.msra.mxu0 0.0
    %322 = vmatpush.msra.mxu0 %v195
    %323 = vmatpush.msra.mxu0 %v193
    %324 = vmatpush.msra.mxu0 %v191
    %325 = vmatpush.msra.mxu0 %v189
    %326 = vmatpush.msra.mxu0 %v187
    %327 = vmatpush.msra.mxu0 %v185
    %328 = vmatpush.msra.mxu0 %v183
    %329 = vmatpush.msra.mxu0 %v181
    %330 = vmatmul.f32.gmra.mxu0 %v312
    %v331 = vpop.f32.mrf.mxu0
    %v332 = vadd.f32 0.0, %v331
    %333 = vdwg.mxu0
    %334 = vmatpush.msra.mxu0 0.0
    %335 = vmatpush.msra.mxu0 0.0
    %336 = vmatpush.msra.mxu0 0.0
    %337 = vmatpush.msra.mxu0 0.0
    %338 = vmatpush.msra.mxu0 0.0
    %339 = vmatpush.msra.mxu0 0.0
    %340 = vmatpush.msra.mxu0 0.0
    %341 = vmatpush.msra.mxu0 0.0
    %342 = vmatpush.msra.mxu0 %v196
    %343 = vmatpush.msra.mxu0 %v194
    %344 = vmatpush.msra.mxu0 %v192
    %345 = vmatpush.msra.mxu0 %v190
    %346 = vmatpush.msra.mxu0 %v188
    %347 = vmatpush.msra.mxu0 %v186
    %348 = vmatpush.msra.mxu0 %v184
    %349 = vmatpush.msra.mxu0 %v182
    %350 = vmatmul.f32.gmra.mxu0 %v312
    %v351 = vpop.f32.mrf.mxu0
    %v352 = vadd.f32 0.0, %v351
    %353 = vdwg.mxu0
    %v356 = vrot.slane %v352, 6
    %v357 = vsel %vm156, %v332, %v356
    %v359 = vadd.f32 %v310, %v357
    %v360 = vxor.u32 %v359, 2147483648
    %v361 = vmul.f32 %v360, 1.442695
    %v362 = vpow.pop %v361
    %v363 = vadd.f32 %v362, 1.0
    %v364 = vrcp.pop %v363
    %v365 = vmul.f32 %v363, %v364
    %v366 = vsub.f32 1.0, %v365
    %v367 = vmul.f32 %v364, %v366
    %v368 = vadd.f32 %v364, %v367
    %vm369 = vweird.f32 %v363
    %vm370 = vweird.f32 %v364
    %vm371 = vmor %vm369, %vm370
    %v372 = vsel %vm371, %v364, %v368
    %v373 = vand.u32 2147483647, %v363
    %vm374 = vcmp.eq.f32.partialorder %v373, 8.507059e+37
    %v375 = vand.u32 %v363, 2147483648
    %v376 = vor.u32 1.1754944e-38, %v375
    %v377 = vsel %vm374, %v376, %v372
    %v378 = vmul.f32 1.0, %v377
    %v380 = vrot.slane %v359, 2
    %v382 = vtanh.pop %v380
    %383 = vrot.lane.b32.xlu0 %v359, 64
    %v384 = vpop.permute.xlu0 %383
    %v385 = vrot.slane %v384, 2
    %v387 = vxor.u32 %v385, 2147483648
    %v388 = vmul.f32 %v387, 1.442695
    %v389 = vpow.pop %v388
    %v390 = vadd.f32 %v389, 1.0
    %v391 = vrcp.pop %v390
    %v392 = vmul.f32 %v390, %v391
    %v393 = vsub.f32 1.0, %v392
    %v394 = vmul.f32 %v391, %v393
    %v395 = vadd.f32 %v391, %v394
    %vm396 = vweird.f32 %v390
    %vm397 = vweird.f32 %v391
    %vm398 = vmor %vm396, %vm397
    %v399 = vsel %vm398, %v391, %v395
    %v400 = vand.u32 2147483647, %v390
    %vm401 = vcmp.eq.f32.partialorder %v400, 8.507059e+37
    %v402 = vand.u32 %v390, 2147483648
    %v403 = vor.u32 1.1754944e-38, %v402
    %v404 = vsel %vm401, %v403, %v399
    %v405 = vmul.f32 1.0, %v404
    %v406 = vmul.f32 %v378, %v300
    %v407 = vmul.f32 %v378, %v382
    %409 = vrot.lane.b32.xlu0 %v407, 64
    %v410 = vpop.permute.xlu0 %409
    %v412 = vadd.f32 %v406, %v410
    %v413 = vtanh.pop %v412
    %415 = vrot.lane.b32.xlu0 %v413, 64
    %v416 = vpop.permute.xlu0 %415
    %v418 = vmul.f32 %v405, %v416
    %s419 = scalar_lea.vmem [#allocation3], 2
    %420 = vst.msk [vmem:[%s419] sm:$0x3] %vm307, %v418
    %s421 = scalar_lea.vmem [#allocation2], 8
    %v422 = vld [vmem:[%s421] sm:$0xf]
    %v424 = vsel %vm198, %v418, 0
    %426 = vmatpush.msra.mxu0 0.0
    %427 = vmatpush.msra.mxu0 0.0
    %428 = vmatpush.msra.mxu0 0.0
    %429 = vmatpush.msra.mxu0 0.0
    %430 = vmatpush.msra.mxu0 0.0
    %431 = vmatpush.msra.mxu0 0.0
    %432 = vmatpush.msra.mxu0 0.0
    %433 = vmatpush.msra.mxu0 0.0
    %434 = vmatpush.msra.mxu0 %v195
    %435 = vmatpush.msra.mxu0 %v193
    %436 = vmatpush.msra.mxu0 %v191
    %437 = vmatpush.msra.mxu0 %v189
    %438 = vmatpush.msra.mxu0 %v187
    %439 = vmatpush.msra.mxu0 %v185
    %440 = vmatpush.msra.mxu0 %v183
    %441 = vmatpush.msra.mxu0 %v181
    %442 = vmatmul.f32.gmra.mxu0 %v424
    %v443 = vpop.f32.mrf.mxu0
    %v444 = vadd.f32 0.0, %v443
    %445 = vdwg.mxu0
    %446 = vmatpush.msra.mxu0 0.0
    %447 = vmatpush.msra.mxu0 0.0
    %448 = vmatpush.msra.mxu0 0.0
    %449 = vmatpush.msra.mxu0 0.0
    %450 = vmatpush.msra.mxu0 0.0
    %451 = vmatpush.msra.mxu0 0.0
    %452 = vmatpush.msra.mxu0 0.0
    %453 = vmatpush.msra.mxu0 0.0
    %454 = vmatpush.msra.mxu0 %v196
    %455 = vmatpush.msra.mxu0 %v194
    %456 = vmatpush.msra.mxu0 %v192
    %457 = vmatpush.msra.mxu0 %v190
    %458 = vmatpush.msra.mxu0 %v188
    %459 = vmatpush.msra.mxu0 %v186
    %460 = vmatpush.msra.mxu0 %v184
    %461 = vmatpush.msra.mxu0 %v182
    %462 = vmatmul.f32.gmra.mxu0 %v424
    %v463 = vpop.f32.mrf.mxu0
    %v464 = vadd.f32 0.0, %v463
    %465 = vdwg.mxu0
    %v468 = vrot.slane %v464, 6
    %v469 = vsel %vm156, %v444, %v468
    %v471 = vadd.f32 %v422, %v469
    %v472 = vxor.u32 %v471, 2147483648
    %v473 = vmul.f32 %v472, 1.442695
    %v474 = vpow.pop %v473
    %v475 = vadd.f32 %v474, 1.0
    %v476 = vrcp.pop %v475
    %v477 = vmul.f32 %v475, %v476
    %v478 = vsub.f32 1.0, %v477
    %v479 = vmul.f32 %v476, %v478
    %v480 = vadd.f32 %v476, %v479
    %vm481 = vweird.f32 %v475
    %vm482 = vweird.f32 %v476
    %vm483 = vmor %vm481, %vm482
    %v484 = vsel %vm483, %v476, %v480
    %v485 = vand.u32 2147483647, %v475
    %vm486 = vcmp.eq.f32.partialorder %v485, 8.507059e+37
    %v487 = vand.u32 %v475, 2147483648
    %v488 = vor.u32 1.1754944e-38, %v487
    %v489 = vsel %vm486, %v488, %v484
    %v490 = vmul.f32 1.0, %v489
    %v492 = vrot.slane %v471, 2
    %v494 = vtanh.pop %v492
    %495 = vrot.lane.b32.xlu0 %v471, 64
    %v496 = vpop.permute.xlu0 %495
    %v497 = vrot.slane %v496, 2
    %v499 = vxor.u32 %v497, 2147483648
    %v500 = vmul.f32 %v499, 1.442695
    %v501 = vpow.pop %v500
    %v502 = vadd.f32 %v501, 1.0
    %v503 = vrcp.pop %v502
    %v504 = vmul.f32 %v502, %v503
    %v505 = vsub.f32 1.0, %v504
    %v506 = vmul.f32 %v503, %v505
    %v507 = vadd.f32 %v503, %v506
    %vm508 = vweird.f32 %v502
    %vm509 = vweird.f32 %v503
    %vm510 = vmor %vm508, %vm509
    %v511 = vsel %vm510, %v503, %v507
    %v512 = vand.u32 2147483647, %v502
    %vm513 = vcmp.eq.f32.partialorder %v512, 8.507059e+37
    %v514 = vand.u32 %v502, 2147483648
    %v515 = vor.u32 1.1754944e-38, %v514
    %v516 = vsel %vm513, %v515, %v511
    %v517 = vmul.f32 1.0, %v516
    %v518 = vmul.f32 %v490, %v412
    %v519 = vmul.f32 %v490, %v494
    %521 = vrot.lane.b32.xlu0 %v519, 64
    %v522 = vpop.permute.xlu0 %521
    %v524 = vadd.f32 %v518, %v522
    %v525 = vtanh.pop %v524
    %527 = vrot.lane.b32.xlu0 %v525, 64
    %v528 = vpop.permute.xlu0 %527
    %v530 = vmul.f32 %v517, %v528
    %s531 = scalar_lea.vmem [#allocation3], 4
    %532 = vst.msk [vmem:[%s531] sm:$0x3] %vm307, %v530
    %s533 = scalar_lea.vmem [#allocation2], 12
    %v534 = vld [vmem:[%s533] sm:$0xf]
    %v536 = vsel %vm198, %v530, 0
    %538 = vmatpush.msra.mxu0 0.0
    %539 = vmatpush.msra.mxu0 0.0
    %540 = vmatpush.msra.mxu0 0.0
    %541 = vmatpush.msra.mxu0 0.0
    %542 = vmatpush.msra.mxu0 0.0
    %543 = vmatpush.msra.mxu0 0.0
    %544 = vmatpush.msra.mxu0 0.0
    %545 = vmatpush.msra.mxu0 0.0
    %546 = vmatpush.msra.mxu0 %v195
    %547 = vmatpush.msra.mxu0 %v193
    %548 = vmatpush.msra.mxu0 %v191
    %549 = vmatpush.msra.mxu0 %v189
    %550 = vmatpush.msra.mxu0 %v187
    %551 = vmatpush.msra.mxu0 %v185
    %552 = vmatpush.msra.mxu0 %v183
    %553 = vmatpush.msra.mxu0 %v181
    %554 = vmatmul.f32.gmra.mxu0 %v536
    %v555 = vpop.f32.mrf.mxu0
    %v556 = vadd.f32 0.0, %v555
    %557 = vdwg.mxu0
    %558 = vmatpush.msra.mxu0 0.0
    %559 = vmatpush.msra.mxu0 0.0
    %560 = vmatpush.msra.mxu0 0.0
    %561 = vmatpush.msra.mxu0 0.0
    %562 = vmatpush.msra.mxu0 0.0
    %563 = vmatpush.msra.mxu0 0.0
    %564 = vmatpush.msra.mxu0 0.0
    %565 = vmatpush.msra.mxu0 0.0
    %566 = vmatpush.msra.mxu0 %v196
    %567 = vmatpush.msra.mxu0 %v194
    %568 = vmatpush.msra.mxu0 %v192
    %569 = vmatpush.msra.mxu0 %v190
    %570 = vmatpush.msra.mxu0 %v188
    %571 = vmatpush.msra.mxu0 %v186
    %572 = vmatpush.msra.mxu0 %v184
    %573 = vmatpush.msra.mxu0 %v182
    %574 = vmatmul.f32.gmra.mxu0 %v536
    %v575 = vpop.f32.mrf.mxu0
    %v576 = vadd.f32 0.0, %v575
    %577 = vdwg.mxu0
    %v580 = vrot.slane %v576, 6
    %v581 = vsel %vm156, %v556, %v580
    %v583 = vadd.f32 %v534, %v581
    %v584 = vxor.u32 %v583, 2147483648
    %v585 = vmul.f32 %v584, 1.442695
    %v586 = vpow.pop %v585
    %v587 = vadd.f32 %v586, 1.0
    %v588 = vrcp.pop %v587
    %v589 = vmul.f32 %v587, %v588
    %v590 = vsub.f32 1.0, %v589
    %v591 = vmul.f32 %v588, %v590
    %v592 = vadd.f32 %v588, %v591
    %vm593 = vweird.f32 %v587
    %vm594 = vweird.f32 %v588
    %vm595 = vmor %vm593, %vm594
    %v596 = vsel %vm595, %v588, %v592
    %v597 = vand.u32 2147483647, %v587
    %vm598 = vcmp.eq.f32.partialorder %v597, 8.507059e+37
    %v599 = vand.u32 %v587, 2147483648
    %v600 = vor.u32 1.1754944e-38, %v599
    %v601 = vsel %vm598, %v600, %v596
    %v602 = vmul.f32 1.0, %v601
    %v604 = vrot.slane %v583, 2
    %v606 = vtanh.pop %v604
    %607 = vrot.lane.b32.xlu0 %v583, 64
    %v608 = vpop.permute.xlu0 %607
    %v609 = vrot.slane %v608, 2
    %v611 = vxor.u32 %v609, 2147483648
    %v612 = vmul.f32 %v611, 1.442695
    %v613 = vpow.pop %v612
    %v614 = vadd.f32 %v613, 1.0
    %v615 = vrcp.pop %v614
    %v616 = vmul.f32 %v614, %v615
    %v617 = vsub.f32 1.0, %v616
    %v618 = vmul.f32 %v615, %v617
    %v619 = vadd.f32 %v615, %v618
    %vm620 = vweird.f32 %v614
    %vm621 = vweird.f32 %v615
    %vm622 = vmor %vm620, %vm621
    %v623 = vsel %vm622, %v615, %v619
    %v624 = vand.u32 2147483647, %v614
    %vm625 = vcmp.eq.f32.partialorder %v624, 8.507059e+37
    %v626 = vand.u32 %v614, 2147483648
    %v627 = vor.u32 1.1754944e-38, %v626
    %v628 = vsel %vm625, %v627, %v623
    %v629 = vmul.f32 1.0, %v628
    %v630 = vmul.f32 %v602, %v524
    %v631 = vmul.f32 %v602, %v606
    %633 = vrot.lane.b32.xlu0 %v631, 64
    %v634 = vpop.permute.xlu0 %633
    %v636 = vadd.f32 %v630, %v634
    %v637 = vtanh.pop %v636
    %639 = vrot.lane.b32.xlu0 %v637, 64
    %v640 = vpop.permute.xlu0 %639
    %v642 = vmul.f32 %v629, %v640
    %s643 = scalar_lea.vmem [#allocation3], 6
    %644 = vst.msk [vmem:[%s643] sm:$0x3] %vm307, %v642
    %s645 = scalar_lea.vmem [#allocation2], 16
    %v646 = vld [vmem:[%s645] sm:$0xf]
    %v648 = vsel %vm198, %v642, 0
    %650 = vmatpush.msra.mxu0 0.0
    %651 = vmatpush.msra.mxu0 0.0
    %652 = vmatpush.msra.mxu0 0.0
    %653 = vmatpush.msra.mxu0 0.0
    %654 = vmatpush.msra.mxu0 0.0
    %655 = vmatpush.msra.mxu0 0.0
    %656 = vmatpush.msra.mxu0 0.0
    %657 = vmatpush.msra.mxu0 0.0
    %658 = vmatpush.msra.mxu0 %v195
    %659 = vmatpush.msra.mxu0 %v193
    %660 = vmatpush.msra.mxu0 %v191
    %661 = vmatpush.msra.mxu0 %v189
    %662 = vmatpush.msra.mxu0 %v187
    %663 = vmatpush.msra.mxu0 %v185
    %664 = vmatpush.msra.mxu0 %v183
    %665 = vmatpush.msra.mxu0 %v181
    %666 = vmatmul.f32.gmra.mxu0 %v648
    %v667 = vpop.f32.mrf.mxu0
    %v668 = vadd.f32 0.0, %v667
    %669 = vdwg.mxu0
    %670 = vmatpush.msra.mxu0 0.0
    %671 = vmatpush.msra.mxu0 0.0
    %672 = vmatpush.msra.mxu0 0.0
    %673 = vmatpush.msra.mxu0 0.0
    %674 = vmatpush.msra.mxu0 0.0
    %675 = vmatpush.msra.mxu0 0.0
    %676 = vmatpush.msra.mxu0 0.0
    %677 = vmatpush.msra.mxu0 0.0
    %678 = vmatpush.msra.mxu0 %v196
    %679 = vmatpush.msra.mxu0 %v194
    %680 = vmatpush.msra.mxu0 %v192
    %681 = vmatpush.msra.mxu0 %v190
    %682 = vmatpush.msra.mxu0 %v188
    %683 = vmatpush.msra.mxu0 %v186
    %684 = vmatpush.msra.mxu0 %v184
    %685 = vmatpush.msra.mxu0 %v182
    %686 = vmatmul.f32.gmra.mxu0 %v648
    %v687 = vpop.f32.mrf.mxu0
    %v688 = vadd.f32 0.0, %v687
    %689 = vdwg.mxu0
    %v692 = vrot.slane %v688, 6
    %v693 = vsel %vm156, %v668, %v692
    %v695 = vadd.f32 %v646, %v693
    %v696 = vxor.u32 %v695, 2147483648
    %v697 = vmul.f32 %v696, 1.442695
    %v698 = vpow.pop %v697
    %v699 = vadd.f32 %v698, 1.0
    %v700 = vrcp.pop %v699
    %v701 = vmul.f32 %v699, %v700
    %v702 = vsub.f32 1.0, %v701
    %v703 = vmul.f32 %v700, %v702
    %v704 = vadd.f32 %v700, %v703
    %vm705 = vweird.f32 %v699
    %vm706 = vweird.f32 %v700
    %vm707 = vmor %vm705, %vm706
    %v708 = vsel %vm707, %v700, %v704
    %v709 = vand.u32 2147483647, %v699
    %vm710 = vcmp.eq.f32.partialorder %v709, 8.507059e+37
    %v711 = vand.u32 %v699, 2147483648
    %v712 = vor.u32 1.1754944e-38, %v711
    %v713 = vsel %vm710, %v712, %v708
    %v714 = vmul.f32 1.0, %v713
    %v716 = vrot.slane %v695, 2
    %v718 = vtanh.pop %v716
    %719 = vrot.lane.b32.xlu0 %v695, 64
    %v720 = vpop.permute.xlu0 %719
    %v721 = vrot.slane %v720, 2
    %v723 = vxor.u32 %v721, 2147483648
    %v724 = vmul.f32 %v723, 1.442695
    %v725 = vpow.pop %v724
    %v726 = vadd.f32 %v725, 1.0
    %v727 = vrcp.pop %v726
    %v728 = vmul.f32 %v726, %v727
    %v729 = vsub.f32 1.0, %v728
    %v730 = vmul.f32 %v727, %v729
    %v731 = vadd.f32 %v727, %v730
    %vm732 = vweird.f32 %v726
    %vm733 = vweird.f32 %v727
    %vm734 = vmor %vm732, %vm733
    %v735 = vsel %vm734, %v727, %v731
    %v736 = vand.u32 2147483647, %v726
    %vm737 = vcmp.eq.f32.partialorder %v736, 8.507059e+37
    %v738 = vand.u32 %v726, 2147483648
    %v739 = vor.u32 1.1754944e-38, %v738
    %v740 = vsel %vm737, %v739, %v735
    %v741 = vmul.f32 1.0, %v740
    %v742 = vmul.f32 %v714, %v636
    %v743 = vmul.f32 %v714, %v718
    %745 = vrot.lane.b32.xlu0 %v743, 64
    %v746 = vpop.permute.xlu0 %745
    %v748 = vadd.f32 %v742, %v746
    %v749 = vtanh.pop %v748
    %751 = vrot.lane.b32.xlu0 %v749, 64
    %v752 = vpop.permute.xlu0 %751
    %v754 = vmul.f32 %v741, %v752
    %s755 = scalar_lea.vmem [#allocation3], 8
    %756 = vst.msk [vmem:[%s755] sm:$0x3] %vm307, %v754
    %s757 = scalar_lea.vmem [#allocation2], 20
    %v758 = vld [vmem:[%s757] sm:$0xf]
    %v760 = vsel %vm198, %v754, 0
    %762 = vmatpush.msra.mxu0 0.0
    %763 = vmatpush.msra.mxu0 0.0
    %764 = vmatpush.msra.mxu0 0.0
    %765 = vmatpush.msra.mxu0 0.0
    %766 = vmatpush.msra.mxu0 0.0
    %767 = vmatpush.msra.mxu0 0.0
    %768 = vmatpush.msra.mxu0 0.0
    %769 = vmatpush.msra.mxu0 0.0
    %770 = vmatpush.msra.mxu0 %v195
    %771 = vmatpush.msra.mxu0 %v193
    %772 = vmatpush.msra.mxu0 %v191
    %773 = vmatpush.msra.mxu0 %v189
    %774 = vmatpush.msra.mxu0 %v187
    %775 = vmatpush.msra.mxu0 %v185
    %776 = vmatpush.msra.mxu0 %v183
    %777 = vmatpush.msra.mxu0 %v181
    %778 = vmatmul.f32.gmra.mxu0 %v760
    %v779 = vpop.f32.mrf.mxu0
    %v780 = vadd.f32 0.0, %v779
    %781 = vdwg.mxu0
    %782 = vmatpush.msra.mxu0 0.0
    %783 = vmatpush.msra.mxu0 0.0
    %784 = vmatpush.msra.mxu0 0.0
    %785 = vmatpush.msra.mxu0 0.0
    %786 = vmatpush.msra.mxu0 0.0
    %787 = vmatpush.msra.mxu0 0.0
    %788 = vmatpush.msra.mxu0 0.0
    %789 = vmatpush.msra.mxu0 0.0
    %790 = vmatpush.msra.mxu0 %v196
    %791 = vmatpush.msra.mxu0 %v194
    %792 = vmatpush.msra.mxu0 %v192
    %793 = vmatpush.msra.mxu0 %v190
    %794 = vmatpush.msra.mxu0 %v188
    %795 = vmatpush.msra.mxu0 %v186
    %796 = vmatpush.msra.mxu0 %v184
    %797 = vmatpush.msra.mxu0 %v182
    %798 = vmatmul.f32.gmra.mxu0 %v760
    %v799 = vpop.f32.mrf.mxu0
    %v800 = vadd.f32 0.0, %v799
    %801 = vdwg.mxu0
    %v804 = vrot.slane %v800, 6
    %v805 = vsel %vm156, %v780, %v804
    %v807 = vadd.f32 %v758, %v805
    %v808 = vxor.u32 %v807, 2147483648
    %v809 = vmul.f32 %v808, 1.442695
    %v810 = vpow.pop %v809
    %v811 = vadd.f32 %v810, 1.0
    %v812 = vrcp.pop %v811
    %v813 = vmul.f32 %v811, %v812
    %v814 = vsub.f32 1.0, %v813
    %v815 = vmul.f32 %v812, %v814
    %v816 = vadd.f32 %v812, %v815
    %vm817 = vweird.f32 %v811
    %vm818 = vweird.f32 %v812
    %vm819 = vmor %vm817, %vm818
    %v820 = vsel %vm819, %v812, %v816
    %v821 = vand.u32 2147483647, %v811
    %vm822 = vcmp.eq.f32.partialorder %v821, 8.507059e+37
    %v823 = vand.u32 %v811, 2147483648
    %v824 = vor.u32 1.1754944e-38, %v823
    %v825 = vsel %vm822, %v824, %v820
    %v826 = vmul.f32 1.0, %v825
    %v828 = vrot.slane %v807, 2
    %v830 = vtanh.pop %v828
    %831 = vrot.lane.b32.xlu0 %v807, 64
    %v832 = vpop.permute.xlu0 %831
    %v833 = vrot.slane %v832, 2
    %v835 = vxor.u32 %v833, 2147483648
    %v836 = vmul.f32 %v835, 1.442695
    %v837 = vpow.pop %v836
    %v838 = vadd.f32 %v837, 1.0
    %v839 = vrcp.pop %v838
    %v840 = vmul.f32 %v838, %v839
    %v841 = vsub.f32 1.0, %v840
    %v842 = vmul.f32 %v839, %v841
    %v843 = vadd.f32 %v839, %v842
    %vm844 = vweird.f32 %v838
    %vm845 = vweird.f32 %v839
    %vm846 = vmor %vm844, %vm845
    %v847 = vsel %vm846, %v839, %v843
    %v848 = vand.u32 2147483647, %v838
    %vm849 = vcmp.eq.f32.partialorder %v848, 8.507059e+37
    %v850 = vand.u32 %v838, 2147483648
    %v851 = vor.u32 1.1754944e-38, %v850
    %v852 = vsel %vm849, %v851, %v847
    %v853 = vmul.f32 1.0, %v852
    %v854 = vmul.f32 %v826, %v748
    %v855 = vmul.f32 %v826, %v830
    %857 = vrot.lane.b32.xlu0 %v855, 64
    %v858 = vpop.permute.xlu0 %857
    %v860 = vadd.f32 %v854, %v858
    %v861 = vtanh.pop %v860
    %863 = vrot.lane.b32.xlu0 %v861, 64
    %v864 = vpop.permute.xlu0 %863
    %v866 = vmul.f32 %v853, %v864
    %s867 = scalar_lea.vmem [#allocation3], 10
    %868 = vst.msk [vmem:[%s867] sm:$0x3] %vm307, %v866
    %s869 = scalar_lea.vmem [#allocation2], 24
    %v870 = vld [vmem:[%s869] sm:$0xf]
    %v872 = vsel %vm198, %v866, 0
    %874 = vmatpush.msra.mxu0 0.0
    %875 = vmatpush.msra.mxu0 0.0
    %876 = vmatpush.msra.mxu0 0.0
    %877 = vmatpush.msra.mxu0 0.0
    %878 = vmatpush.msra.mxu0 0.0
    %879 = vmatpush.msra.mxu0 0.0
    %880 = vmatpush.msra.mxu0 0.0
    %881 = vmatpush.msra.mxu0 0.0
    %882 = vmatpush.msra.mxu0 %v195
    %883 = vmatpush.msra.mxu0 %v193
    %884 = vmatpush.msra.mxu0 %v191
    %885 = vmatpush.msra.mxu0 %v189
    %886 = vmatpush.msra.mxu0 %v187
    %887 = vmatpush.msra.mxu0 %v185
    %888 = vmatpush.msra.mxu0 %v183
    %889 = vmatpush.msra.mxu0 %v181
    %890 = vmatmul.f32.gmra.mxu0 %v872
    %v891 = vpop.f32.mrf.mxu0
    %v892 = vadd.f32 0.0, %v891
    %893 = vdwg.mxu0
    %894 = vmatpush.msra.mxu0 0.0
    %895 = vmatpush.msra.mxu0 0.0
    %896 = vmatpush.msra.mxu0 0.0
    %897 = vmatpush.msra.mxu0 0.0
    %898 = vmatpush.msra.mxu0 0.0
    %899 = vmatpush.msra.mxu0 0.0
    %900 = vmatpush.msra.mxu0 0.0
    %901 = vmatpush.msra.mxu0 0.0
    %902 = vmatpush.msra.mxu0 %v196
    %903 = vmatpush.msra.mxu0 %v194
    %904 = vmatpush.msra.mxu0 %v192
    %905 = vmatpush.msra.mxu0 %v190
    %906 = vmatpush.msra.mxu0 %v188
    %907 = vmatpush.msra.mxu0 %v186
    %908 = vmatpush.msra.mxu0 %v184
    %909 = vmatpush.msra.mxu0 %v182
    %910 = vmatmul.f32.gmra.mxu0 %v872
    %v911 = vpop.f32.mrf.mxu0
    %v912 = vadd.f32 0.0, %v911
    %913 = vdwg.mxu0
    %v916 = vrot.slane %v912, 6
    %v917 = vsel %vm156, %v892, %v916
    %v919 = vadd.f32 %v870, %v917
    %v920 = vxor.u32 %v919, 2147483648
    %v921 = vmul.f32 %v920, 1.442695
    %v922 = vpow.pop %v921
    %v923 = vadd.f32 %v922, 1.0
    %v924 = vrcp.pop %v923
    %v925 = vmul.f32 %v923, %v924
    %v926 = vsub.f32 1.0, %v925
    %v927 = vmul.f32 %v924, %v926
    %v928 = vadd.f32 %v924, %v927
    %vm929 = vweird.f32 %v923
    %vm930 = vweird.f32 %v924
    %vm931 = vmor %vm929, %vm930
    %v932 = vsel %vm931, %v924, %v928
    %v933 = vand.u32 2147483647, %v923
    %vm934 = vcmp.eq.f32.partialorder %v933, 8.507059e+37
    %v935 = vand.u32 %v923, 2147483648
    %v936 = vor.u32 1.1754944e-38, %v935
    %v937 = vsel %vm934, %v936, %v932
    %v938 = vmul.f32 1.0, %v937
    %v940 = vrot.slane %v919, 2
    %v942 = vtanh.pop %v940
    %943 = vrot.lane.b32.xlu0 %v919, 64
    %v944 = vpop.permute.xlu0 %943
    %v945 = vrot.slane %v944, 2
    %v947 = vxor.u32 %v945, 2147483648
    %v948 = vmul.f32 %v947, 1.442695
    %v949 = vpow.pop %v948
    %v950 = vadd.f32 %v949, 1.0
    %v951 = vrcp.pop %v950
    %v952 = vmul.f32 %v950, %v951
    %v953 = vsub.f32 1.0, %v952
    %v954 = vmul.f32 %v951, %v953
    %v955 = vadd.f32 %v951, %v954
    %vm956 = vweird.f32 %v950
    %vm957 = vweird.f32 %v951
    %vm958 = vmor %vm956, %vm957
    %v959 = vsel %vm958, %v951, %v955
    %v960 = vand.u32 2147483647, %v950
    %vm961 = vcmp.eq.f32.partialorder %v960, 8.507059e+37
    %v962 = vand.u32 %v950, 2147483648
    %v963 = vor.u32 1.1754944e-38, %v962
    %v964 = vsel %vm961, %v963, %v959
    %v965 = vmul.f32 1.0, %v964
    %v966 = vmul.f32 %v938, %v860
    %v967 = vmul.f32 %v938, %v942
    %969 = vrot.lane.b32.xlu0 %v967, 64
    %v970 = vpop.permute.xlu0 %969
    %v972 = vadd.f32 %v966, %v970
    %v973 = vtanh.pop %v972
    %975 = vrot.lane.b32.xlu0 %v973, 64
    %v976 = vpop.permute.xlu0 %975
    %v978 = vmul.f32 %v965, %v976
    %s979 = scalar_lea.vmem [#allocation3], 12
    %980 = vst.msk [vmem:[%s979] sm:$0x3] %vm307, %v978
    %s981 = scalar_lea.vmem [#allocation2], 28
    %v982 = vld [vmem:[%s981] sm:$0xf]
    %v984 = vsel %vm198, %v978, 0
    %986 = vmatpush.msra.mxu0 0.0
    %987 = vmatpush.msra.mxu0 0.0
    %988 = vmatpush.msra.mxu0 0.0
    %989 = vmatpush.msra.mxu0 0.0
    %990 = vmatpush.msra.mxu0 0.0
    %991 = vmatpush.msra.mxu0 0.0
    %992 = vmatpush.msra.mxu0 0.0
    %993 = vmatpush.msra.mxu0 0.0
    %994 = vmatpush.msra.mxu0 %v195
    %995 = vmatpush.msra.mxu0 %v193
    %996 = vmatpush.msra.mxu0 %v191
    %997 = vmatpush.msra.mxu0 %v189
    %998 = vmatpush.msra.mxu0 %v187
    %999 = vmatpush.msra.mxu0 %v185
    %1000 = vmatpush.msra.mxu0 %v183
    %1001 = vmatpush.msra.mxu0 %v181
    %1002 = vmatmul.f32.gmra.mxu0 %v984
    %v1003 = vpop.f32.mrf.mxu0
    %v1004 = vadd.f32 0.0, %v1003
    %1005 = vdwg.mxu0
    %1006 = vmatpush.msra.mxu0 0.0
    %1007 = vmatpush.msra.mxu0 0.0
    %1008 = vmatpush.msra.mxu0 0.0
    %1009 = vmatpush.msra.mxu0 0.0
    %1010 = vmatpush.msra.mxu0 0.0
    %1011 = vmatpush.msra.mxu0 0.0
    %1012 = vmatpush.msra.mxu0 0.0
    %1013 = vmatpush.msra.mxu0 0.0
    %1014 = vmatpush.msra.mxu0 %v196
    %1015 = vmatpush.msra.mxu0 %v194
    %1016 = vmatpush.msra.mxu0 %v192
    %1017 = vmatpush.msra.mxu0 %v190
    %1018 = vmatpush.msra.mxu0 %v188
    %1019 = vmatpush.msra.mxu0 %v186
    %1020 = vmatpush.msra.mxu0 %v184
    %1021 = vmatpush.msra.mxu0 %v182
    %1022 = vmatmul.f32.gmra.mxu0 %v984
    %v1023 = vpop.f32.mrf.mxu0
    %v1024 = vadd.f32 0.0, %v1023
    %1025 = vdwg.mxu0
    %v1028 = vrot.slane %v1024, 6
    %v1029 = vsel %vm156, %v1004, %v1028
    %v1031 = vadd.f32 %v982, %v1029
    %v1032 = vxor.u32 %v1031, 2147483648
    %v1033 = vmul.f32 %v1032, 1.442695
    %v1034 = vpow.pop %v1033
    %v1035 = vadd.f32 %v1034, 1.0
    %v1036 = vrcp.pop %v1035
    %v1037 = vmul.f32 %v1035, %v1036
    %v1038 = vsub.f32 1.0, %v1037
    %v1039 = vmul.f32 %v1036, %v1038
    %v1040 = vadd.f32 %v1036, %v1039
    %vm1041 = vweird.f32 %v1035
    %vm1042 = vweird.f32 %v1036
    %vm1043 = vmor %vm1041, %vm1042
    %v1044 = vsel %vm1043, %v1036, %v1040
    %v1045 = vand.u32 2147483647, %v1035
    %vm1046 = vcmp.eq.f32.partialorder %v1045, 8.507059e+37
    %v1047 = vand.u32 %v1035, 2147483648
    %v1048 = vor.u32 1.1754944e-38, %v1047
    %v1049 = vsel %vm1046, %v1048, %v1044
    %v1050 = vmul.f32 1.0, %v1049
    %v1052 = vrot.slane %v1031, 2
    %v1054 = vtanh.pop %v1052
    %1055 = vrot.lane.b32.xlu0 %v1031, 64
    %v1056 = vpop.permute.xlu0 %1055
    %v1057 = vrot.slane %v1056, 2
    %v1059 = vxor.u32 %v1057, 2147483648
    %v1060 = vmul.f32 %v1059, 1.442695
    %v1061 = vpow.pop %v1060
    %v1062 = vadd.f32 %v1061, 1.0
    %v1063 = vrcp.pop %v1062
    %v1064 = vmul.f32 %v1062, %v1063
    %v1065 = vsub.f32 1.0, %v1064
    %v1066 = vmul.f32 %v1063, %v1065
    %v1067 = vadd.f32 %v1063, %v1066
    %vm1068 = vweird.f32 %v1062
    %vm1069 = vweird.f32 %v1063
    %vm1070 = vmor %vm1068, %vm1069
    %v1071 = vsel %vm1070, %v1063, %v1067
    %v1072 = vand.u32 2147483647, %v1062
    %vm1073 = vcmp.eq.f32.partialorder %v1072, 8.507059e+37
    %v1074 = vand.u32 %v1062, 2147483648
    %v1075 = vor.u32 1.1754944e-38, %v1074
    %v1076 = vsel %vm1073, %v1075, %v1071
    %v1077 = vmul.f32 1.0, %v1076
    %v1078 = vmul.f32 %v1050, %v972
    %v1079 = vmul.f32 %v1050, %v1054
    %1081 = vrot.lane.b32.xlu0 %v1079, 64
    %v1082 = vpop.permute.xlu0 %1081
    %v1084 = vadd.f32 %v1078, %v1082
    %v1085 = vtanh.pop %v1084
    %1087 = vrot.lane.b32.xlu0 %v1085, 64
    %v1088 = vpop.permute.xlu0 %1087
    %v1090 = vmul.f32 %v1077, %v1088
    %s1091 = scalar_lea.vmem [#allocation3], 14
    %1092 = vst.msk [vmem:[%s1091] sm:$0x3] %vm307, %v1090
    %v1093 = vld [vmem:[#allocation3] sm:$0x3]
    %v1094 = vld [vmem:[#allocation3 + $0x2] sm:$0x3]
    %v1095 = vld [vmem:[#allocation3 + $0x4] sm:$0x3]
    %v1096 = vld [vmem:[#allocation3 + $0x6] sm:$0x3]
    %v1097 = vld [vmem:[#allocation3 + $0x8] sm:$0x3]
    %v1098 = vld [vmem:[#allocation3 + $0xa] sm:$0x3]
    %v1099 = vld [vmem:[#allocation3 + $0xc] sm:$0x3]
    %v1100 = vld [vmem:[#allocation3 + $0xe] sm:$0x3]
    %v1101 = vld [vmem:[%s4] sm:$0x1]
    %v1103 = vperm.slane %v1101, 0
    %v1105 = vmul.f32 %v1093, %v1103
    %v1106 = vmul.f32 %v1094, %v1103
    %v1107 = vmul.f32 %v1095, %v1103
    %v1108 = vmul.f32 %v1096, %v1103
    %v1109 = vmul.f32 %v1097, %v1103
    %v1110 = vmul.f32 %v1098, %v1103
    %v1111 = vmul.f32 %v1099, %v1103
    %v1112 = vmul.f32 %v1100, %v1103
    %v1113 = vsel %vm307, %v1105, 0.0
    %1114 = vadd.xlane.f32.xlu0 %v1113
    %v1115 = vpop.xlane.xlu0 %1114
    %v1116 = vsel %vm307, %v1106, 0.0
    %1117 = vadd.xlane.f32.xlu0 %v1116
    %v1118 = vpop.xlane.xlu0 %1117
    %v1119 = vsel %vm307, %v1107, 0.0
    %1120 = vadd.xlane.f32.xlu0 %v1119
    %v1121 = vpop.xlane.xlu0 %1120
    %v1122 = vsel %vm307, %v1108, 0.0
    %1123 = vadd.xlane.f32.xlu0 %v1122
    %v1124 = vpop.xlane.xlu0 %1123
    %v1125 = vsel %vm307, %v1109, 0.0
    %1126 = vadd.xlane.f32.xlu0 %v1125
    %v1127 = vpop.xlane.xlu0 %1126
    %v1128 = vsel %vm307, %v1110, 0.0
    %1129 = vadd.xlane.f32.xlu0 %v1128
    %v1130 = vpop.xlane.xlu0 %1129
    %v1131 = vsel %vm307, %v1111, 0.0
    %1132 = vadd.xlane.f32.xlu0 %v1131
    %v1133 = vpop.xlane.xlu0 %1132
    %v1134 = vsel %vm307, %v1112, 0.0
    %1135 = vadd.xlane.f32.xlu0 %v1134
    %v1136 = vpop.xlane.xlu0 %1135
    %s1137 = sld [smem:[#allocation4]]
    %v1138 = vstv %s1137
    %v1139 = vadd.f32 %v1115, %v1138
    %v1140 = vadd.f32 %v1118, %v1138
    %v1141 = vadd.f32 %v1121, %v1138
    %v1142 = vadd.f32 %v1124, %v1138
    %v1143 = vadd.f32 %v1127, %v1138
    %v1144 = vadd.f32 %v1130, %v1138
    %v1145 = vadd.f32 %v1133, %v1138
    %v1146 = vadd.f32 %v1136, %v1138
    %v1155 = vlaneseq
    %v1156 = vand.u32 %v1155, 127
    %v1157 = vperm.slane %v1139, %v1156
    %v1158 = vperm.slane %v1140, %v1156
    %v1159 = vperm.slane %v1141, %v1156
    %v1160 = vperm.slane %v1142, %v1156
    %v1161 = vperm.slane %v1143, %v1156
    %v1162 = vperm.slane %v1144, %v1156
    %v1163 = vperm.slane %v1145, %v1156
    %v1164 = vperm.slane %v1146, %v1156
    %vm1165 = vcmask 1041409
    %v1166 = vsel %vm1165, %v1158, %v1157
    %vm1167 = vcmask 1042434
    %v1168 = vsel %vm1167, %v1159, %v1166
    %vm1169 = vcmask 1043459
    %v1170 = vsel %vm1169, %v1160, %v1168
    %vm1171 = vcmask 1044484
    %v1172 = vsel %vm1171, %v1161, %v1170
    %vm1173 = vcmask 1045509
    %v1174 = vsel %vm1173, %v1162, %v1172
    %vm1175 = vcmask 1046534
    %v1176 = vsel %vm1175, %v1163, %v1174
    %vm1177 = vcmask 1047559
    %v1178 = vsel %vm1177, %v1164, %v1176
    %vm1180 = vcmask 15360
    %1181 = vst.msk [vmem:[%s6] sm:$0xff] %vm1180, %v1178
    // Predicated region
    $region30: #{tpu_custom_call.1} parent=1 // pred_check
      _
    $region31: #{tpu_custom_call.1} parent=1 // pred_check_branch
      %1183 = sbr.rel (0) target = $region33
    $region32: #{tpu_custom_call.1} parent=1 // pred_region
      _
    $region33: #{tpu_custom_call.1} parent=1 // pred_fallthru
      _
    // Predicated region
    $region34: #{tpu_custom_call.1} parent=1 // pred_check
      _
    $region35: #{tpu_custom_call.1} parent=1 // pred_check_branch
      %1185 = sbr.rel (0) target = $region37
    $region36: #{tpu_custom_call.1} parent=1 // pred_region
      _
    $region37: #{tpu_custom_call.1} parent=1 // pred_fallthru
      _
    %1186 = vsyncpa [#allocation6], 1

</llo_original>
